<compile_context>
chip_gen: v7x
topology: tpu7x:2x2x1
jax: 0.10.0
libtpu: 0.0.40
codegen_flags: <defaults>
</compile_context>

<pallas_src>
import functools

import jax
import jax.numpy as jnp
from jax.experimental import pallas as pl
from jax.experimental.pallas import tpu as pltpu


# ----------------------------------------------------------------------------- kernels

def _attn_ln_kernel(q_ref, k_ref, v_ref, bias_ref,
                    wq_ref, bq_ref, wk_ref, bk_ref, wv_ref, bv_ref,
                    wo_ref, bo_ref, g_ref, beta_ref, o_ref, *, heads):
    """Fused per-batch-element block:
       SelfAttention(q, k, v, mask) -> fc_out -> (+ residual q) -> LayerNorm.
       wq/wk/wv arrive block-diagonal (E, E) in bf16; the 1/sqrt(E) scale is
       already folded into wq/bq; bias_ref is the additive mask (0 / -1e20*scale)."""
    Lq, E = q_ref.shape
    Lk = k_ref.shape[0]
    dh = E // heads

    q32 = q_ref[...]                                   # f32 copy kept for the residual
    qb = q32.astype(jnp.bfloat16)
    kb = k_ref[...].astype(jnp.bfloat16)
    vb = v_ref[...].astype(jnp.bfloat16)

    # All-head projections as lane-dense (L, E) @ (E, E) matmuls (f32 accumulation).
    q_p = jnp.dot(qb, wq_ref[...], preferred_element_type=jnp.float32) + bq_ref[...]
    k_p = jnp.dot(kb, wk_ref[...], preferred_element_type=jnp.float32) + bk_ref[...]
    v_p = jnp.dot(vb, wv_ref[...], preferred_element_type=jnp.float32) + bv_ref[...]

    # Head-leading stacks (H, L, Dh) built from static lane slices (no reshapes
    # that split the lane dim, no 3-D transposes).
    qh = jnp.stack([q_p[:, h * dh:(h + 1) * dh] for h in range(heads)], axis=0)
    kh = jnp.stack([k_p[:, h * dh:(h + 1) * dh] for h in range(heads)], axis=0)
    vh = jnp.stack([v_p[:, h * dh:(h + 1) * dh] for h in range(heads)], axis=0)

    # energy[h, q, k] (scale already folded into the query projection).
    energy = jnp.einsum('hqd,hkd->hqk',
                        qh.astype(jnp.bfloat16), kh.astype(jnp.bfloat16),
                        preferred_element_type=jnp.float32)
    energy = energy + bias_ref[...][None, :, :]        # additive mask bias

    m = jnp.max(energy, axis=-1, keepdims=True)
    p = jnp.exp(energy - m)
    s = jnp.sum(p, axis=-1, keepdims=True)
    attn = p * pl.reciprocal(s, approx=True)           # softmax over dim=-1

    ctx = jnp.einsum('hqk,hkd->hqd',
                     attn.astype(jnp.bfloat16), vh.astype(jnp.bfloat16),
                     preferred_element_type=jnp.float32)           # (H, Lq, Dh)
    ctx2d = jnp.concatenate([ctx[h] for h in range(heads)], axis=1)  # (Lq, E), head-major cols

    proj = (jnp.dot(ctx2d.astype(jnp.bfloat16), wo_ref[...],
                    preferred_element_type=jnp.float32) + bo_ref[...])

    z = q32 + proj                                     # residual (dropout == identity)
    mu = jnp.mean(z, axis=-1, keepdims=True)
    var = jnp.mean(jnp.square(z - mu), axis=-1, keepdims=True)
    zn = (z - mu) * jax.lax.rsqrt(var + jnp.float32(1e-5))
    o_ref[...] = zn * g_ref[...] + beta_ref[...]


def _ffn_ln_kernel(x_ref, w1_ref, b1_ref, w2_ref, b2_ref, g_ref, beta_ref, o_ref):
    """Fused FFN block: relu(x@w1+b1)@w2 + b2, residual add, LayerNorm."""
    x32 = x_ref[...]
    h = (jnp.dot(x32.astype(jnp.bfloat16), w1_ref[...],
                 preferred_element_type=jnp.float32) + b1_ref[...])
    h = jnp.maximum(h, 0.0)
    y = (jnp.dot(h.astype(jnp.bfloat16), w2_ref[...],
                 preferred_element_type=jnp.float32) + b2_ref[...])
    z = x32 + y
    mu = jnp.mean(z, axis=-1, keepdims=True)
    var = jnp.mean(jnp.square(z - mu), axis=-1, keepdims=True)
    zn = (z - mu) * jax.lax.rsqrt(var + jnp.float32(1e-5))
    o_ref[...] = zn * g_ref[...] + beta_ref[...]


def _linear_kernel(x_ref, w_ref, b_ref, o_ref):
    o_ref[...] = (jnp.dot(x_ref[...].astype(jnp.bfloat16), w_ref[...],
                          preferred_element_type=jnp.float32) + b_ref[...])


# ----------------------------------------------------------------------------- wrappers

def _block_diag(w, heads):
    """(Dh, Dh) per-head weight -> (E, E) block-diagonal weight (heads share it)."""
    dh = w.shape[0]
    eye = jnp.eye(heads, dtype=w.dtype)
    return jnp.einsum('hg,ij->higj', eye, w).reshape(heads * dh, heads * dh)


def _row_tile(m, pref=512):
    """Row tile for the 2-D kernels; keeps VMEM usage bounded when scaling up
    (v7x has only 64 MiB VMEM). Toy sizes just use the full extent."""
    return pref if (m % pref == 0) else m


def attn_ln_pallas(p_attn, ln_g, ln_b, q, k, v, bias, embed_size, heads):
    """q: (N, Lq, E); k, v: (N, Lk, E); bias: (N, Lq, Lk) additive mask bias.
       Returns LayerNorm(q + fc_out(SelfAttention(q, k, v)))."""
    N, Lq, E = q.shape
    Lk = k.shape[1]
    scale = 1.0 / float(embed_size) ** 0.5

    # Block-diagonal per-head projection weights (bf16), scale folded into wq/bq.
    wq = _block_diag(p_attn["wq"] * scale, heads).astype(jnp.bfloat16)
    bq = jnp.tile(p_attn["bq"] * scale, (1, heads))
    wk = _block_diag(p_attn["wk"], heads).astype(jnp.bfloat16)
    bk = jnp.tile(p_attn["bk"], (1, heads))
    wv = _block_diag(p_attn["wv"], heads).astype(jnp.bfloat16)
    bv = jnp.tile(p_attn["bv"], (1, heads))
    wo = p_attn["wo"].astype(jnp.bfloat16)
    bo = p_attn["bo"]

    kern = functools.partial(_attn_ln_kernel, heads=heads)
    full2d = lambda n: (0, 0)
    return pl.pallas_call(
        kern,
        out_shape=jax.ShapeDtypeStruct((N, Lq, E), jnp.float32),
        grid=(N,),
        in_specs=[
            pl.BlockSpec((None, Lq, E), lambda n: (n, 0, 0)),    # q
            pl.BlockSpec((None, Lk, E), lambda n: (n, 0, 0)),    # k
            pl.BlockSpec((None, Lk, E), lambda n: (n, 0, 0)),    # v
            pl.BlockSpec((None, Lq, Lk), lambda n: (n, 0, 0)),   # mask bias
            pl.BlockSpec((E, E), full2d), pl.BlockSpec((1, E), full2d),   # wq, bq
            pl.BlockSpec((E, E), full2d), pl.BlockSpec((1, E), full2d),   # wk, bk
            pl.BlockSpec((E, E), full2d), pl.BlockSpec((1, E), full2d),   # wv, bv
            pl.BlockSpec((E, E), full2d), pl.BlockSpec((1, E), full2d),   # wo, bo
            pl.BlockSpec((1, E), full2d), pl.BlockSpec((1, E), full2d),   # ln gamma, beta
        ],
        out_specs=pl.BlockSpec((None, Lq, E), lambda n: (n, 0, 0)),
        compiler_params=pltpu.CompilerParams(
            dimension_semantics=("parallel",)),
    )(q, k, v, bias, wq, bq, wk, bk, wv, bv, wo, bo, ln_g, ln_b)


def ffn_ln_pallas(x, w1, b1, w2, b2, g, beta):
    """x: (M, E). Returns LayerNorm(x + FFN(x))."""
    M, E = x.shape
    hidden = w1.shape[1]
    tm = _row_tile(M)
    full2d = lambda i: (0, 0)
    return pl.pallas_call(
        _ffn_ln_kernel,
        out_shape=jax.ShapeDtypeStruct((M, E), jnp.float32),
        grid=(M // tm,),
        in_specs=[
            pl.BlockSpec((tm, E), lambda i: (i, 0)),
            pl.BlockSpec((E, hidden), full2d), pl.BlockSpec((1, hidden), full2d),
            pl.BlockSpec((hidden, E), full2d), pl.BlockSpec((1, E), full2d),
            pl.BlockSpec((1, E), full2d), pl.BlockSpec((1, E), full2d),
        ],
        out_specs=pl.BlockSpec((tm, E), lambda i: (i, 0)),
        compiler_params=pltpu.CompilerParams(
            dimension_semantics=("parallel",)),
    )(x, w1.astype(jnp.bfloat16), b1, w2.astype(jnp.bfloat16), b2, g, beta)


def linear_pallas(x, w, b, lane_pad=128):
    """x: (M, In), w: (In, Out), b: (1, Out). Pads Out up to a multiple of 128
       so the store path is lane-dense; result is sliced back to Out."""
    M, In = x.shape
    Out = w.shape[1]
    out_p = ((Out + lane_pad - 1) // lane_pad) * lane_pad
    if out_p != Out:
        w = jnp.pad(w, ((0, 0), (0, out_p - Out)))
        b = jnp.pad(b, ((0, 0), (0, out_p - Out)))
    tm = _row_tile(M)
    full2d = lambda i: (0, 0)
    y = pl.pallas_call(
        _linear_kernel,
        out_shape=jax.ShapeDtypeStruct((M, out_p), jnp.float32),
        grid=(M // tm,),
        in_specs=[
            pl.BlockSpec((tm, In), lambda i: (i, 0)),
            pl.BlockSpec((In, out_p), full2d),
            pl.BlockSpec((1, out_p), full2d),
        ],
        out_specs=pl.BlockSpec((tm, out_p), lambda i: (i, 0)),
        compiler_params=pltpu.CompilerParams(
            dimension_semantics=("parallel",)),
    )(x, w.astype(jnp.bfloat16), b)
    return y[:, :Out]


# ----------------------------------------------------------------------------- model

def decoder_block_forward(p, q, kv, src_bias, trg_bias, embed_size, heads):
    N, T, E = q.shape
    # decoder self-attention + residual + LayerNorm (one fused kernel)
    x = attn_ln_pallas(p["dec_attn"], p["ln_g"], p["ln_b"],
                       q, q, q, trg_bias, embed_size, heads)
    tb = p["tblock"]
    # cross-attention + residual + LayerNorm1 (one fused kernel)
    y = attn_ln_pallas(tb["attn"], tb["ln1_g"], tb["ln1_b"],
                       x, kv, kv, src_bias, embed_size, heads)
    # FFN + residual + LayerNorm2 (one fused kernel)
    out = ffn_ln_pallas(y.reshape(N * T, E), tb["ff_w1"], tb["ff_b1"],
                        tb["ff_w2"], tb["ff_b2"], tb["ln2_g"], tb["ln2_b"])
    return out.reshape(N, T, E)


def decoder_forward(params, x_tokens, encoder_kv, src_mask, trg_mask, embed_size, heads):
    n, t = x_tokens.shape
    emb_scale = float(embed_size) ** 0.5
    att_scale = 1.0 / emb_scale

    # Embedding gathers stay in JAX glue (data-dependent gather); dropout == identity (eval).
    word_emb = params["word_emb"][x_tokens] * emb_scale
    positions = jnp.arange(t, dtype=jnp.int32)
    pos_emb = params["pos_emb"][positions][None, :, :] * emb_scale
    out = word_emb + pos_emb

    # Masks as additive biases (0 where visible, -1e20 * 1/sqrt(E) where masked),
    # with the singleton head axis squeezed away.  Computed once per forward.
    neg = jnp.float32(-1e20 * att_scale)
    src_bias = jnp.where(src_mask[:, 0] == 0, neg, jnp.float32(0.0)).astype(jnp.float32)
    trg_bias = jnp.where(trg_mask[:, 0] == 0, neg, jnp.float32(0.0)).astype(jnp.float32)

    for blk in params["blocks"]:
        out = decoder_block_forward(blk, out, encoder_kv, src_bias, trg_bias,
                                    embed_size, heads)

    logits = linear_pallas(out.reshape(n * t, embed_size),
                           params["fc_w"], params["fc_b"])
    return logits.reshape(n, t, -1)


# ----------------------------------------------------------------------------- params

def _init_linear(key, fan_in, fan_out):
    k1, k2 = jax.random.split(key)
    w = jax.random.normal(k1, (fan_in, fan_out), jnp.float32) / jnp.sqrt(float(fan_in))
    b = 0.01 * jax.random.normal(k2, (1, fan_out), jnp.float32)
    return w, b


def _init_attention(key, embed_size, heads):
    dh = embed_size // heads
    keys = jax.random.split(key, 4)
    wq, bq = _init_linear(keys[0], dh, dh)
    wk, bk = _init_linear(keys[1], dh, dh)
    wv, bv = _init_linear(keys[2], dh, dh)
    wo, bo = _init_linear(keys[3], embed_size, embed_size)
    return dict(wq=wq, bq=bq, wk=wk, bk=bk, wv=wv, bv=bv, wo=wo, bo=bo)


def _init_transformer_block(key, embed_size, heads, forward_expansion):
    keys = jax.random.split(key, 3)
    hidden = embed_size * forward_expansion
    w1, b1 = _init_linear(keys[1], embed_size, hidden)
    w2, b2 = _init_linear(keys[2], hidden, embed_size)
    return dict(
        attn=_init_attention(keys[0], embed_size, heads),
        ln1_g=jnp.ones((1, embed_size), jnp.float32),
        ln1_b=jnp.zeros((1, embed_size), jnp.float32),
        ln2_g=jnp.ones((1, embed_size), jnp.float32),
        ln2_b=jnp.zeros((1, embed_size), jnp.float32),
        ff_w1=w1, ff_b1=b1, ff_w2=w2, ff_b2=b2,
    )


def _init_decoder_block(key, embed_size, heads, forward_expansion):
    keys = jax.random.split(key, 2)
    return dict(
        dec_attn=_init_attention(keys[0], embed_size, heads),
        ln_g=jnp.ones((1, embed_size), jnp.float32),
        ln_b=jnp.zeros((1, embed_size), jnp.float32),
        tblock=_init_transformer_block(keys[1], embed_size, heads, forward_expansion),
    )


def init_decoder_params(key, trg_vocab_size, embed_size, n_layers, heads,
                        forward_expansion, max_length):
    keys = jax.random.split(key, n_layers + 3)
    word_emb = 0.1 * jax.random.normal(keys[0], (trg_vocab_size, embed_size), jnp.float32)
    pos_emb = 0.1 * jax.random.normal(keys[1], (max_length, embed_size), jnp.float32)
    fc_w, fc_b = _init_linear(keys[2], embed_size, trg_vocab_size)
    blocks = [_init_decoder_block(keys[3 + i], embed_size, heads, forward_expansion)
              for i in range(n_layers)]
    return dict(word_emb=word_emb, pos_emb=pos_emb, fc_w=fc_w, fc_b=fc_b, blocks=blocks)


# ----------------------------------------------------------------------------- main

if __name__ == "__main__":
    # small config consistent with the module
    trg_vocab_size = 32
    embed_size = 64
    n_layers = 2
    heads = 8
    forward_expansion = 2
    max_length = 16

    batch, trg_len, src_len = 2, 8, 8

    key = jax.random.PRNGKey(0)
    k_par, k_tok, k_enc = jax.random.split(key, 3)

    params = init_decoder_params(k_par, trg_vocab_size, embed_size, n_layers,
                                 heads, forward_expansion, max_length)

    x_tokens = jax.random.randint(k_tok, (batch, trg_len), 0, trg_vocab_size, jnp.int32)
    encoder_kv = 0.1 * jax.random.normal(k_enc, (batch, src_len, embed_size), jnp.float32)

    # src_mask: all-visible; trg_mask: causal. Stored as float (0 = masked), shape (N,1,Q,K).
    src_mask = jnp.ones((batch, 1, trg_len, src_len), jnp.float32)
    trg_mask = jnp.tril(jnp.ones((trg_len, trg_len), jnp.float32))[None, None]
    trg_mask = jnp.broadcast_to(trg_mask, (batch, 1, trg_len, trg_len))

    fwd = jax.jit(functools.partial(decoder_forward,
                                    embed_size=embed_size, heads=heads))
    logits = fwd(params, x_tokens, encoder_kv, src_mask, trg_mask)
    jax.block_until_ready(logits)

    assert logits.shape == (batch, trg_len, trg_vocab_size)
    assert bool(jnp.all(jnp.isfinite(logits)))
    print("KERNEL_OK")
</pallas_src>

<mosaic_0001>
module attributes {stable_mosaic.version = 11 : i64} {
  func.func @_attn_ln_kernel(%arg0: i32, %arg1: memref<1x8x64xf32, #tpu.memory_space<vmem>>, %arg2: memref<1x8x64xf32, #tpu.memory_space<vmem>>, %arg3: memref<1x8x64xf32, #tpu.memory_space<vmem>>, %arg4: memref<1x8x8xf32, #tpu.memory_space<vmem>>, %arg5: memref<64x64xbf16, #tpu.memory_space<vmem>>, %arg6: memref<1x64xf32, #tpu.memory_space<vmem>>, %arg7: memref<64x64xbf16, #tpu.memory_space<vmem>>, %arg8: memref<1x64xf32, #tpu.memory_space<vmem>>, %arg9: memref<64x64xbf16, #tpu.memory_space<vmem>>, %arg10: memref<1x64xf32, #tpu.memory_space<vmem>>, %arg11: memref<64x64xbf16, #tpu.memory_space<vmem>>, %arg12: memref<1x64xf32, #tpu.memory_space<vmem>>, %arg13: memref<1x64xf32, #tpu.memory_space<vmem>>, %arg14: memref<1x64xf32, #tpu.memory_space<vmem>>, %arg15: memref<1x8x64xf32, #tpu.memory_space<vmem>>) attributes {dimension_semantics = [#tpu.dimension_semantics<parallel>], iteration_bounds = array<i64: 2>, scalar_prefetch = 0 : i64, scratch_operands = 0 : i64, tpu.core_type = #tpu.core_type<tc>, window_params = [{transform_indices = @transform_0, window_bounds = array<i64: 1, 8, 64>}, {transform_indices = @transform_1, window_bounds = array<i64: 1, 8, 64>}, {transform_indices = @transform_2, window_bounds = array<i64: 1, 8, 64>}, {transform_indices = @transform_3, window_bounds = array<i64: 1, 8, 8>}, {pipeline_mode = #tpu.pipeline_mode<synchronous>, transform_indices = @transform_4, window_bounds = array<i64: 64, 64>}, {pipeline_mode = #tpu.pipeline_mode<synchronous>, transform_indices = @transform_5, window_bounds = array<i64: 1, 64>}, {pipeline_mode = #tpu.pipeline_mode<synchronous>, transform_indices = @transform_6, window_bounds = array<i64: 64, 64>}, {pipeline_mode = #tpu.pipeline_mode<synchronous>, transform_indices = @transform_7, window_bounds = array<i64: 1, 64>}, {pipeline_mode = #tpu.pipeline_mode<synchronous>, transform_indices = @transform_8, window_bounds = array<i64: 64, 64>}, {pipeline_mode = #tpu.pipeline_mode<synchronous>, transform_indices = @transform_9, window_bounds = array<i64: 1, 64>}, {pipeline_mode = #tpu.pipeline_mode<synchronous>, transform_indices = @transform_10, window_bounds = array<i64: 64, 64>}, {pipeline_mode = #tpu.pipeline_mode<synchronous>, transform_indices = @transform_11, window_bounds = array<i64: 1, 64>}, {pipeline_mode = #tpu.pipeline_mode<synchronous>, transform_indices = @transform_12, window_bounds = array<i64: 1, 64>}, {pipeline_mode = #tpu.pipeline_mode<synchronous>, transform_indices = @transform_13, window_bounds = array<i64: 1, 64>}, {transform_indices = @transform_14, window_bounds = array<i64: 1, 8, 64>}]} {
    %c0 = arith.constant 0 : index
    %c0_0 = arith.constant 0 : index
    %c0_1 = arith.constant 0 : index
    %0 = vector.load %arg1[%c0, %c0_0, %c0_1] : memref<1x8x64xf32, #tpu.memory_space<vmem>>, vector<1x8x64xf32>
    %1 = vector.shape_cast %0 : vector<1x8x64xf32> to vector<8x64xf32>
    %2 = arith.truncf %1 : vector<8x64xf32> to vector<8x64xbf16>
    %c0_2 = arith.constant 0 : index
    %c0_3 = arith.constant 0 : index
    %c0_4 = arith.constant 0 : index
    %3 = vector.load %arg2[%c0_2, %c0_3, %c0_4] : memref<1x8x64xf32, #tpu.memory_space<vmem>>, vector<1x8x64xf32>
    %4 = vector.shape_cast %3 : vector<1x8x64xf32> to vector<8x64xf32>
    %5 = arith.truncf %4 : vector<8x64xf32> to vector<8x64xbf16>
    %c0_5 = arith.constant 0 : index
    %c0_6 = arith.constant 0 : index
    %c0_7 = arith.constant 0 : index
    %6 = vector.load %arg3[%c0_5, %c0_6, %c0_7] : memref<1x8x64xf32, #tpu.memory_space<vmem>>, vector<1x8x64xf32>
    %7 = vector.shape_cast %6 : vector<1x8x64xf32> to vector<8x64xf32>
    %8 = arith.truncf %7 : vector<8x64xf32> to vector<8x64xbf16>
    %c0_8 = arith.constant 0 : index
    %c0_9 = arith.constant 0 : index
    %9 = vector.load %arg5[%c0_8, %c0_9] : memref<64x64xbf16, #tpu.memory_space<vmem>>, vector<64x64xbf16>
    %cst = arith.constant dense<0.000000e+00> : vector<8x64xf32>
    %10 = tpu.matmul %2, %9, %cst {dimension_numbers = #tpu.dot_dimension_numbers<[1], [0], [0], [1], [0, 0, 1, 1], [], []>} : vector<8x64xbf16>, vector<64x64xbf16>, vector<8x64xf32> -> vector<8x64xf32>
    %c0_10 = arith.constant 0 : index
    %c0_11 = arith.constant 0 : index
    %11 = vector.load %arg6[%c0_10, %c0_11] : memref<1x64xf32, #tpu.memory_space<vmem>>, vector<1x64xf32>
    %12 = vector.broadcast %11 : vector<1x64xf32> to vector<8x64xf32>
    %13 = arith.addf %10, %12 : vector<8x64xf32>
    %c0_12 = arith.constant 0 : index
    %c0_13 = arith.constant 0 : index
    %14 = vector.load %arg7[%c0_12, %c0_13] : memref<64x64xbf16, #tpu.memory_space<vmem>>, vector<64x64xbf16>
    %cst_14 = arith.constant dense<0.000000e+00> : vector<8x64xf32>
    %15 = tpu.matmul %5, %14, %cst_14 {dimension_numbers = #tpu.dot_dimension_numbers<[1], [0], [0], [1], [0, 0, 1, 1], [], []>} : vector<8x64xbf16>, vector<64x64xbf16>, vector<8x64xf32> -> vector<8x64xf32>
    %c0_15 = arith.constant 0 : index
    %c0_16 = arith.constant 0 : index
    %16 = vector.load %arg8[%c0_15, %c0_16] : memref<1x64xf32, #tpu.memory_space<vmem>>, vector<1x64xf32>
    %17 = vector.broadcast %16 : vector<1x64xf32> to vector<8x64xf32>
    %18 = arith.addf %15, %17 : vector<8x64xf32>
    %c0_17 = arith.constant 0 : index
    %c0_18 = arith.constant 0 : index
    %19 = vector.load %arg9[%c0_17, %c0_18] : memref<64x64xbf16, #tpu.memory_space<vmem>>, vector<64x64xbf16>
    %cst_19 = arith.constant dense<0.000000e+00> : vector<8x64xf32>
    %20 = tpu.matmul %8, %19, %cst_19 {dimension_numbers = #tpu.dot_dimension_numbers<[1], [0], [0], [1], [0, 0, 1, 1], [], []>} : vector<8x64xbf16>, vector<64x64xbf16>, vector<8x64xf32> -> vector<8x64xf32>
    %c0_20 = arith.constant 0 : index
    %c0_21 = arith.constant 0 : index
    %21 = vector.load %arg10[%c0_20, %c0_21] : memref<1x64xf32, #tpu.memory_space<vmem>>, vector<1x64xf32>
    %22 = vector.broadcast %21 : vector<1x64xf32> to vector<8x64xf32>
    %23 = arith.addf %20, %22 : vector<8x64xf32>
    %24 = vector.extract_strided_slice %13 {offsets = [0, 0], sizes = [8, 8], strides = [1, 1]} : vector<8x64xf32> to vector<8x8xf32>
    %25 = vector.extract_strided_slice %13 {offsets = [0, 8], sizes = [8, 8], strides = [1, 1]} : vector<8x64xf32> to vector<8x8xf32>
    %26 = vector.extract_strided_slice %13 {offsets = [0, 16], sizes = [8, 8], strides = [1, 1]} : vector<8x64xf32> to vector<8x8xf32>
    %27 = vector.extract_strided_slice %13 {offsets = [0, 24], sizes = [8, 8], strides = [1, 1]} : vector<8x64xf32> to vector<8x8xf32>
    %28 = vector.extract_strided_slice %13 {offsets = [0, 32], sizes = [8, 8], strides = [1, 1]} : vector<8x64xf32> to vector<8x8xf32>
    %29 = vector.extract_strided_slice %13 {offsets = [0, 40], sizes = [8, 8], strides = [1, 1]} : vector<8x64xf32> to vector<8x8xf32>
    %30 = vector.extract_strided_slice %13 {offsets = [0, 48], sizes = [8, 8], strides = [1, 1]} : vector<8x64xf32> to vector<8x8xf32>
    %31 = vector.extract_strided_slice %13 {offsets = [0, 56], sizes = [8, 8], strides = [1, 1]} : vector<8x64xf32> to vector<8x8xf32>
    %32 = vector.shape_cast %24 : vector<8x8xf32> to vector<1x8x8xf32>
    %33 = vector.shape_cast %25 : vector<8x8xf32> to vector<1x8x8xf32>
    %34 = vector.shape_cast %26 : vector<8x8xf32> to vector<1x8x8xf32>
    %35 = vector.shape_cast %27 : vector<8x8xf32> to vector<1x8x8xf32>
    %36 = vector.shape_cast %28 : vector<8x8xf32> to vector<1x8x8xf32>
    %37 = vector.shape_cast %29 : vector<8x8xf32> to vector<1x8x8xf32>
    %38 = vector.shape_cast %30 : vector<8x8xf32> to vector<1x8x8xf32>
    %39 = vector.shape_cast %31 : vector<8x8xf32> to vector<1x8x8xf32>
    %40 = tpu.concatenate %32, %33, %34, %35, %36, %37, %38, %39 in 0 : vector<1x8x8xf32>, vector<1x8x8xf32>, vector<1x8x8xf32>, vector<1x8x8xf32>, vector<1x8x8xf32>, vector<1x8x8xf32>, vector<1x8x8xf32>, vector<1x8x8xf32> -> vector<8x8x8xf32>
    %41 = vector.extract_strided_slice %18 {offsets = [0, 0], sizes = [8, 8], strides = [1, 1]} : vector<8x64xf32> to vector<8x8xf32>
    %42 = vector.extract_strided_slice %18 {offsets = [0, 8], sizes = [8, 8], strides = [1, 1]} : vector<8x64xf32> to vector<8x8xf32>
    %43 = vector.extract_strided_slice %18 {offsets = [0, 16], sizes = [8, 8], strides = [1, 1]} : vector<8x64xf32> to vector<8x8xf32>
    %44 = vector.extract_strided_slice %18 {offsets = [0, 24], sizes = [8, 8], strides = [1, 1]} : vector<8x64xf32> to vector<8x8xf32>
    %45 = vector.extract_strided_slice %18 {offsets = [0, 32], sizes = [8, 8], strides = [1, 1]} : vector<8x64xf32> to vector<8x8xf32>
    %46 = vector.extract_strided_slice %18 {offsets = [0, 40], sizes = [8, 8], strides = [1, 1]} : vector<8x64xf32> to vector<8x8xf32>
    %47 = vector.extract_strided_slice %18 {offsets = [0, 48], sizes = [8, 8], strides = [1, 1]} : vector<8x64xf32> to vector<8x8xf32>
    %48 = vector.extract_strided_slice %18 {offsets = [0, 56], sizes = [8, 8], strides = [1, 1]} : vector<8x64xf32> to vector<8x8xf32>
    %49 = vector.shape_cast %41 : vector<8x8xf32> to vector<1x8x8xf32>
    %50 = vector.shape_cast %42 : vector<8x8xf32> to vector<1x8x8xf32>
    %51 = vector.shape_cast %43 : vector<8x8xf32> to vector<1x8x8xf32>
    %52 = vector.shape_cast %44 : vector<8x8xf32> to vector<1x8x8xf32>
    %53 = vector.shape_cast %45 : vector<8x8xf32> to vector<1x8x8xf32>
    %54 = vector.shape_cast %46 : vector<8x8xf32> to vector<1x8x8xf32>
    %55 = vector.shape_cast %47 : vector<8x8xf32> to vector<1x8x8xf32>
    %56 = vector.shape_cast %48 : vector<8x8xf32> to vector<1x8x8xf32>
    %57 = tpu.concatenate %49, %50, %51, %52, %53, %54, %55, %56 in 0 : vector<1x8x8xf32>, vector<1x8x8xf32>, vector<1x8x8xf32>, vector<1x8x8xf32>, vector<1x8x8xf32>, vector<1x8x8xf32>, vector<1x8x8xf32>, vector<1x8x8xf32> -> vector<8x8x8xf32>
    %58 = vector.extract_strided_slice %23 {offsets = [0, 0], sizes = [8, 8], strides = [1, 1]} : vector<8x64xf32> to vector<8x8xf32>
    %59 = vector.extract_strided_slice %23 {offsets = [0, 8], sizes = [8, 8], strides = [1, 1]} : vector<8x64xf32> to vector<8x8xf32>
    %60 = vector.extract_strided_slice %23 {offsets = [0, 16], sizes = [8, 8], strides = [1, 1]} : vector<8x64xf32> to vector<8x8xf32>
    %61 = vector.extract_strided_slice %23 {offsets = [0, 24], sizes = [8, 8], strides = [1, 1]} : vector<8x64xf32> to vector<8x8xf32>
    %62 = vector.extract_strided_slice %23 {offsets = [0, 32], sizes = [8, 8], strides = [1, 1]} : vector<8x64xf32> to vector<8x8xf32>
    %63 = vector.extract_strided_slice %23 {offsets = [0, 40], sizes = [8, 8], strides = [1, 1]} : vector<8x64xf32> to vector<8x8xf32>
    %64 = vector.extract_strided_slice %23 {offsets = [0, 48], sizes = [8, 8], strides = [1, 1]} : vector<8x64xf32> to vector<8x8xf32>
    %65 = vector.extract_strided_slice %23 {offsets = [0, 56], sizes = [8, 8], strides = [1, 1]} : vector<8x64xf32> to vector<8x8xf32>
    %66 = vector.shape_cast %58 : vector<8x8xf32> to vector<1x8x8xf32>
    %67 = vector.shape_cast %59 : vector<8x8xf32> to vector<1x8x8xf32>
    %68 = vector.shape_cast %60 : vector<8x8xf32> to vector<1x8x8xf32>
    %69 = vector.shape_cast %61 : vector<8x8xf32> to vector<1x8x8xf32>
    %70 = vector.shape_cast %62 : vector<8x8xf32> to vector<1x8x8xf32>
    %71 = vector.shape_cast %63 : vector<8x8xf32> to vector<1x8x8xf32>
    %72 = vector.shape_cast %64 : vector<8x8xf32> to vector<1x8x8xf32>
    %73 = vector.shape_cast %65 : vector<8x8xf32> to vector<1x8x8xf32>
    %74 = tpu.concatenate %66, %67, %68, %69, %70, %71, %72, %73 in 0 : vector<1x8x8xf32>, vector<1x8x8xf32>, vector<1x8x8xf32>, vector<1x8x8xf32>, vector<1x8x8xf32>, vector<1x8x8xf32>, vector<1x8x8xf32>, vector<1x8x8xf32> -> vector<8x8x8xf32>
    %75 = arith.truncf %40 : vector<8x8x8xf32> to vector<8x8x8xbf16>
    %76 = arith.truncf %57 : vector<8x8x8xf32> to vector<8x8x8xbf16>
    "tpu.trace_start"() <{level = 10 : i32, message = "hqd,hkd->hqk"}> : () -> ()
    %cst_22 = arith.constant dense<0.000000e+00> : vector<8x8x8xf32>
    %77 = tpu.matmul %75, %76, %cst_22 {dimension_numbers = #tpu.dot_dimension_numbers<[2], [2], [1], [1], [0, 0, 0, 1, 1, 1], [0], [0]>} : vector<8x8x8xbf16>, vector<8x8x8xbf16>, vector<8x8x8xf32> -> vector<8x8x8xf32>
    "tpu.trace_stop"() : () -> ()
    %c0_23 = arith.constant 0 : index
    %c0_24 = arith.constant 0 : index
    %c0_25 = arith.constant 0 : index
    %78 = vector.load %arg4[%c0_23, %c0_24, %c0_25] : memref<1x8x8xf32, #tpu.memory_space<vmem>>, vector<1x8x8xf32>
    %79 = vector.shape_cast %78 : vector<1x8x8xf32> to vector<8x8xf32>
    %80 = vector.shape_cast %79 : vector<8x8xf32> to vector<1x8x8xf32>
    %81 = vector.broadcast %80 : vector<1x8x8xf32> to vector<8x8x8xf32>
    %82 = arith.addf %77, %81 : vector<8x8x8xf32>
    %cst_26 = arith.constant dense<0xFF800000> : vector<8x8xf32>
    %83 = vector.multi_reduction <maximumf>, %82, %cst_26 [2] : vector<8x8x8xf32> to vector<8x8xf32>
    %84 = vector.shape_cast %83 : vector<8x8xf32> to vector<8x8x1xf32>
    %85 = vector.broadcast %84 : vector<8x8x1xf32> to vector<8x8x8xf32>
    %86 = arith.subf %82, %85 : vector<8x8x8xf32>
    %87 = math.exp %86 : vector<8x8x8xf32>
    %cst_27 = arith.constant dense<0.000000e+00> : vector<8x8xf32>
    %88 = vector.multi_reduction <add>, %87, %cst_27 [2] : vector<8x8x8xf32> to vector<8x8xf32>
    %89 = vector.shape_cast %88 : vector<8x8xf32> to vector<8x8x1xf32>
    %90 = tpu.reciprocal %89 {approx = true} : vector<8x8x1xf32> -> vector<8x8x1xf32>
    %91 = vector.broadcast %90 : vector<8x8x1xf32> to vector<8x8x8xf32>
    %92 = arith.mulf %87, %91 : vector<8x8x8xf32>
    %93 = arith.truncf %92 : vector<8x8x8xf32> to vector<8x8x8xbf16>
    %94 = arith.truncf %74 : vector<8x8x8xf32> to vector<8x8x8xbf16>
    "tpu.trace_start"() <{level = 10 : i32, message = "hqk,hkd->hqd"}> : () -> ()
    %cst_28 = arith.constant dense<0.000000e+00> : vector<8x8x8xf32>
    %95 = tpu.matmul %93, %94, %cst_28 {dimension_numbers = #tpu.dot_dimension_numbers<[2], [1], [1], [2], [0, 0, 0, 1, 1, 2], [0], [0]>} : vector<8x8x8xbf16>, vector<8x8x8xbf16>, vector<8x8x8xf32> -> vector<8x8x8xf32>
    "tpu.trace_stop"() : () -> ()
    %96 = vector.extract_strided_slice %95 {offsets = [0, 0, 0], sizes = [1, 8, 8], strides = [1, 1, 1]} : vector<8x8x8xf32> to vector<1x8x8xf32>
    %97 = vector.shape_cast %96 : vector<1x8x8xf32> to vector<8x8xf32>
    %98 = vector.extract_strided_slice %95 {offsets = [1, 0, 0], sizes = [1, 8, 8], strides = [1, 1, 1]} : vector<8x8x8xf32> to vector<1x8x8xf32>
    %99 = vector.shape_cast %98 : vector<1x8x8xf32> to vector<8x8xf32>
    %100 = vector.extract_strided_slice %95 {offsets = [2, 0, 0], sizes = [1, 8, 8], strides = [1, 1, 1]} : vector<8x8x8xf32> to vector<1x8x8xf32>
    %101 = vector.shape_cast %100 : vector<1x8x8xf32> to vector<8x8xf32>
    %102 = vector.extract_strided_slice %95 {offsets = [3, 0, 0], sizes = [1, 8, 8], strides = [1, 1, 1]} : vector<8x8x8xf32> to vector<1x8x8xf32>
    %103 = vector.shape_cast %102 : vector<1x8x8xf32> to vector<8x8xf32>
    %104 = vector.extract_strided_slice %95 {offsets = [4, 0, 0], sizes = [1, 8, 8], strides = [1, 1, 1]} : vector<8x8x8xf32> to vector<1x8x8xf32>
    %105 = vector.shape_cast %104 : vector<1x8x8xf32> to vector<8x8xf32>
    %106 = vector.extract_strided_slice %95 {offsets = [5, 0, 0], sizes = [1, 8, 8], strides = [1, 1, 1]} : vector<8x8x8xf32> to vector<1x8x8xf32>
    %107 = vector.shape_cast %106 : vector<1x8x8xf32> to vector<8x8xf32>
    %108 = vector.extract_strided_slice %95 {offsets = [6, 0, 0], sizes = [1, 8, 8], strides = [1, 1, 1]} : vector<8x8x8xf32> to vector<1x8x8xf32>
    %109 = vector.shape_cast %108 : vector<1x8x8xf32> to vector<8x8xf32>
    %110 = vector.extract_strided_slice %95 {offsets = [7, 0, 0], sizes = [1, 8, 8], strides = [1, 1, 1]} : vector<8x8x8xf32> to vector<1x8x8xf32>
    %111 = vector.shape_cast %110 : vector<1x8x8xf32> to vector<8x8xf32>
    %112 = tpu.concatenate %97, %99, %101, %103, %105, %107, %109, %111 in 1 : vector<8x8xf32>, vector<8x8xf32>, vector<8x8xf32>, vector<8x8xf32>, vector<8x8xf32>, vector<8x8xf32>, vector<8x8xf32>, vector<8x8xf32> -> vector<8x64xf32>
    %113 = arith.truncf %112 : vector<8x64xf32> to vector<8x64xbf16>
    %c0_29 = arith.constant 0 : index
    %c0_30 = arith.constant 0 : index
    %114 = vector.load %arg11[%c0_29, %c0_30] : memref<64x64xbf16, #tpu.memory_space<vmem>>, vector<64x64xbf16>
    %cst_31 = arith.constant dense<0.000000e+00> : vector<8x64xf32>
    %115 = tpu.matmul %113, %114, %cst_31 {dimension_numbers = #tpu.dot_dimension_numbers<[1], [0], [0], [1], [0, 0, 1, 1], [], []>} : vector<8x64xbf16>, vector<64x64xbf16>, vector<8x64xf32> -> vector<8x64xf32>
    %c0_32 = arith.constant 0 : index
    %c0_33 = arith.constant 0 : index
    %116 = vector.load %arg12[%c0_32, %c0_33] : memref<1x64xf32, #tpu.memory_space<vmem>>, vector<1x64xf32>
    %117 = vector.broadcast %116 : vector<1x64xf32> to vector<8x64xf32>
    %118 = arith.addf %115, %117 : vector<8x64xf32>
    %119 = arith.addf %1, %118 : vector<8x64xf32>
    %cst_34 = arith.constant dense<0.000000e+00> : vector<8xf32>
    %120 = vector.multi_reduction <add>, %119, %cst_34 [1] : vector<8x64xf32> to vector<8xf32>
    %121 = vector.shape_cast %120 : vector<8xf32> to vector<8x1xf32>
    %cst_35 = arith.constant 6.400000e+01 : f32
    %122 = vector.broadcast %cst_35 : f32 to vector<8x1xf32>
    %123 = arith.divf %121, %122 : vector<8x1xf32>
    %124 = vector.broadcast %123 : vector<8x1xf32> to vector<8x64xf32>
    %125 = arith.subf %119, %124 : vector<8x64xf32>
    %126 = arith.mulf %125, %125 : vector<8x64xf32>
    %cst_36 = arith.constant dense<0.000000e+00> : vector<8xf32>
    %127 = vector.multi_reduction <add>, %126, %cst_36 [1] : vector<8x64xf32> to vector<8xf32>
    %128 = vector.shape_cast %127 : vector<8xf32> to vector<8x1xf32>
    %cst_37 = arith.constant 6.400000e+01 : f32
    %129 = vector.broadcast %cst_37 : f32 to vector<8x1xf32>
    %130 = arith.divf %128, %129 : vector<8x1xf32>
    %131 = vector.broadcast %123 : vector<8x1xf32> to vector<8x64xf32>
    %132 = arith.subf %119, %131 : vector<8x64xf32>
    %cst_38 = arith.constant 9.99999974E-6 : f32
    %133 = vector.broadcast %cst_38 : f32 to vector<8x1xf32>
    %134 = arith.addf %130, %133 : vector<8x1xf32>
    %135 = math.rsqrt %134 : vector<8x1xf32>
    %136 = vector.broadcast %135 : vector<8x1xf32> to vector<8x64xf32>
    %137 = arith.mulf %132, %136 : vector<8x64xf32>
    %c0_39 = arith.constant 0 : index
    %c0_40 = arith.constant 0 : index
    %138 = vector.load %arg13[%c0_39, %c0_40] : memref<1x64xf32, #tpu.memory_space<vmem>>, vector<1x64xf32>
    %139 = vector.broadcast %138 : vector<1x64xf32> to vector<8x64xf32>
    %140 = arith.mulf %137, %139 : vector<8x64xf32>
    %c0_41 = arith.constant 0 : index
    %c0_42 = arith.constant 0 : index
    %141 = vector.load %arg14[%c0_41, %c0_42] : memref<1x64xf32, #tpu.memory_space<vmem>>, vector<1x64xf32>
    %142 = vector.broadcast %141 : vector<1x64xf32> to vector<8x64xf32>
    %143 = arith.addf %140, %142 : vector<8x64xf32>
    %c0_43 = arith.constant 0 : index
    %c0_44 = arith.constant 0 : index
    %c0_45 = arith.constant 0 : index
    %144 = vector.load %arg15[%c0_43, %c0_44, %c0_45] : memref<1x8x64xf32, #tpu.memory_space<vmem>>, vector<1x8x64xf32>
    %145 = vector.shape_cast %144 : vector<1x8x64xf32> to vector<8x64xf32>
    %146 = vector.shape_cast %143 : vector<8x64xf32> to vector<1x8x64xf32>
    tpu.vector_store %arg15[%c0_43, %c0_44, %c0_45], %146 {strides = array<i32>} : memref<1x8x64xf32, #tpu.memory_space<vmem>>, vector<1x8x64xf32>,
    return
  }
  func.func @transform_0(%arg0: i32) -> (i32, i32, i32) {
    %c0_i32 = arith.constant 0 : i32
    %c0_i32_0 = arith.constant 0 : i32
    %c0_i32_1 = arith.constant 0 : i32
    return %arg0, %c0_i32, %c0_i32_0 : i32, i32, i32
  }
  func.func @transform_1(%arg0: i32) -> (i32, i32, i32) {
    %c0_i32 = arith.constant 0 : i32
    %c0_i32_0 = arith.constant 0 : i32
    %c0_i32_1 = arith.constant 0 : i32
    return %arg0, %c0_i32, %c0_i32_0 : i32, i32, i32
  }
  func.func @transform_2(%arg0: i32) -> (i32, i32, i32) {
    %c0_i32 = arith.constant 0 : i32
    %c0_i32_0 = arith.constant 0 : i32
    %c0_i32_1 = arith.constant 0 : i32
    return %arg0, %c0_i32, %c0_i32_0 : i32, i32, i32
  }
  func.func @transform_3(%arg0: i32) -> (i32, i32, i32) {
    %c0_i32 = arith.constant 0 : i32
    %c0_i32_0 = arith.constant 0 : i32
    %c0_i32_1 = arith.constant 0 : i32
    return %arg0, %c0_i32, %c0_i32_0 : i32, i32, i32
  }
  func.func @transform_4(%arg0: i32) -> (i32, i32) {
    %c0_i32 = arith.constant 0 : i32
    %c0_i32_0 = arith.constant 0 : i32
    %c0_i32_1 = arith.constant 0 : i32
    return %c0_i32, %c0_i32_0 : i32, i32
  }
  func.func @transform_5(%arg0: i32) -> (i32, i32) {
    %c0_i32 = arith.constant 0 : i32
    %c0_i32_0 = arith.constant 0 : i32
    %c0_i32_1 = arith.constant 0 : i32
    return %c0_i32, %c0_i32_0 : i32, i32
  }
  func.func @transform_6(%arg0: i32) -> (i32, i32) {
    %c0_i32 = arith.constant 0 : i32
    %c0_i32_0 = arith.constant 0 : i32
    %c0_i32_1 = arith.constant 0 : i32
    return %c0_i32, %c0_i32_0 : i32, i32
  }
  func.func @transform_7(%arg0: i32) -> (i32, i32) {
    %c0_i32 = arith.constant 0 : i32
    %c0_i32_0 = arith.constant 0 : i32
    %c0_i32_1 = arith.constant 0 : i32
    return %c0_i32, %c0_i32_0 : i32, i32
  }
  func.func @transform_8(%arg0: i32) -> (i32, i32) {
    %c0_i32 = arith.constant 0 : i32
    %c0_i32_0 = arith.constant 0 : i32
    %c0_i32_1 = arith.constant 0 : i32
    return %c0_i32, %c0_i32_0 : i32, i32
  }
  func.func @transform_9(%arg0: i32) -> (i32, i32) {
    %c0_i32 = arith.constant 0 : i32
    %c0_i32_0 = arith.constant 0 : i32
    %c0_i32_1 = arith.constant 0 : i32
    return %c0_i32, %c0_i32_0 : i32, i32
  }
  func.func @transform_10(%arg0: i32) -> (i32, i32) {
    %c0_i32 = arith.constant 0 : i32
    %c0_i32_0 = arith.constant 0 : i32
    %c0_i32_1 = arith.constant 0 : i32
    return %c0_i32, %c0_i32_0 : i32, i32
  }
  func.func @transform_11(%arg0: i32) -> (i32, i32) {
    %c0_i32 = arith.constant 0 : i32
    %c0_i32_0 = arith.constant 0 : i32
    %c0_i32_1 = arith.constant 0 : i32
    return %c0_i32, %c0_i32_0 : i32, i32
  }
  func.func @transform_12(%arg0: i32) -> (i32, i32) {
    %c0_i32 = arith.constant 0 : i32
    %c0_i32_0 = arith.constant 0 : i32
    %c0_i32_1 = arith.constant 0 : i32
    return %c0_i32, %c0_i32_0 : i32, i32
  }
  func.func @transform_13(%arg0: i32) -> (i32, i32) {
    %c0_i32 = arith.constant 0 : i32
    %c0_i32_0 = arith.constant 0 : i32
    %c0_i32_1 = arith.constant 0 : i32
    return %c0_i32, %c0_i32_0 : i32, i32
  }
  func.func @transform_14(%arg0: i32) -> (i32, i32, i32) {
    %c0_i32 = arith.constant 0 : i32
    %c0_i32_0 = arith.constant 0 : i32
    %c0_i32_1 = arith.constant 0 : i32
    return %arg0, %c0_i32, %c0_i32_0 : i32, i32, i32
  }
}

module attributes {stable_mosaic.version = 11 : i64} {
  func.func @_ffn_ln_kernel(%arg0: i32, %arg1: memref<16x64xf32, #tpu.memory_space<vmem>>, %arg2: memref<64x128xbf16, #tpu.memory_space<vmem>>, %arg3: memref<1x128xf32, #tpu.memory_space<vmem>>, %arg4: memref<128x64xbf16, #tpu.memory_space<vmem>>, %arg5: memref<1x64xf32, #tpu.memory_space<vmem>>, %arg6: memref<1x64xf32, #tpu.memory_space<vmem>>, %arg7: memref<1x64xf32, #tpu.memory_space<vmem>>, %arg8: memref<16x64xf32, #tpu.memory_space<vmem>>) attributes {dimension_semantics = [#tpu.dimension_semantics<parallel>], iteration_bounds = array<i64: 1>, scalar_prefetch = 0 : i64, scratch_operands = 0 : i64, tpu.core_type = #tpu.core_type<tc>, window_params = [{transform_indices = @transform_0, window_bounds = array<i64: 16, 64>}, {pipeline_mode = #tpu.pipeline_mode<synchronous>, transform_indices = @transform_1, window_bounds = array<i64: 64, 128>}, {pipeline_mode = #tpu.pipeline_mode<synchronous>, transform_indices = @transform_2, window_bounds = array<i64: 1, 128>}, {pipeline_mode = #tpu.pipeline_mode<synchronous>, transform_indices = @transform_3, window_bounds = array<i64: 128, 64>}, {pipeline_mode = #tpu.pipeline_mode<synchronous>, transform_indices = @transform_4, window_bounds = array<i64: 1, 64>}, {pipeline_mode = #tpu.pipeline_mode<synchronous>, transform_indices = @transform_5, window_bounds = array<i64: 1, 64>}, {pipeline_mode = #tpu.pipeline_mode<synchronous>, transform_indices = @transform_6, window_bounds = array<i64: 1, 64>}, {transform_indices = @transform_7, window_bounds = array<i64: 16, 64>}]} {
    %c0 = arith.constant 0 : index
    %c0_0 = arith.constant 0 : index
    %0 = vector.load %arg1[%c0, %c0_0] : memref<16x64xf32, #tpu.memory_space<vmem>>, vector<16x64xf32>
    %1 = arith.truncf %0 : vector<16x64xf32> to vector<16x64xbf16>
    %c0_1 = arith.constant 0 : index
    %c0_2 = arith.constant 0 : index
    %2 = vector.load %arg2[%c0_1, %c0_2] : memref<64x128xbf16, #tpu.memory_space<vmem>>, vector<64x128xbf16>
    %cst = arith.constant dense<0.000000e+00> : vector<16x128xf32>
    %3 = tpu.matmul %1, %2, %cst {dimension_numbers = #tpu.dot_dimension_numbers<[1], [0], [0], [1], [0, 0, 1, 1], [], []>} : vector<16x64xbf16>, vector<64x128xbf16>, vector<16x128xf32> -> vector<16x128xf32>
    %c0_3 = arith.constant 0 : index
    %c0_4 = arith.constant 0 : index
    %4 = vector.load %arg3[%c0_3, %c0_4] : memref<1x128xf32, #tpu.memory_space<vmem>>, vector<1x128xf32>
    %5 = vector.broadcast %4 : vector<1x128xf32> to vector<16x128xf32>
    %6 = arith.addf %3, %5 : vector<16x128xf32>
    %cst_5 = arith.constant 0.000000e+00 : f32
    %7 = vector.broadcast %cst_5 : f32 to vector<16x128xf32>
    %8 = arith.maximumf %6, %7 : vector<16x128xf32>
    %9 = arith.truncf %8 : vector<16x128xf32> to vector<16x128xbf16>
    %c0_6 = arith.constant 0 : index
    %c0_7 = arith.constant 0 : index
    %10 = vector.load %arg4[%c0_6, %c0_7] : memref<128x64xbf16, #tpu.memory_space<vmem>>, vector<128x64xbf16>
    %cst_8 = arith.constant dense<0.000000e+00> : vector<16x64xf32>
    %11 = tpu.matmul %9, %10, %cst_8 {dimension_numbers = #tpu.dot_dimension_numbers<[1], [0], [0], [1], [0, 0, 1, 1], [], []>} : vector<16x128xbf16>, vector<128x64xbf16>, vector<16x64xf32> -> vector<16x64xf32>
    %c0_9 = arith.constant 0 : index
    %c0_10 = arith.constant 0 : index
    %12 = vector.load %arg5[%c0_9, %c0_10] : memref<1x64xf32, #tpu.memory_space<vmem>>, vector<1x64xf32>
    %13 = vector.broadcast %12 : vector<1x64xf32> to vector<16x64xf32>
    %14 = arith.addf %11, %13 : vector<16x64xf32>
    %15 = arith.addf %0, %14 : vector<16x64xf32>
    %cst_11 = arith.constant dense<0.000000e+00> : vector<16xf32>
    %16 = vector.multi_reduction <add>, %15, %cst_11 [1] : vector<16x64xf32> to vector<16xf32>
    %17 = vector.shape_cast %16 : vector<16xf32> to vector<16x1xf32>
    %cst_12 = arith.constant 6.400000e+01 : f32
    %18 = vector.broadcast %cst_12 : f32 to vector<16x1xf32>
    %19 = arith.divf %17, %18 : vector<16x1xf32>
    %20 = vector.broadcast %19 : vector<16x1xf32> to vector<16x64xf32>
    %21 = arith.subf %15, %20 : vector<16x64xf32>
    %22 = arith.mulf %21, %21 : vector<16x64xf32>
    %cst_13 = arith.constant dense<0.000000e+00> : vector<16xf32>
    %23 = vector.multi_reduction <add>, %22, %cst_13 [1] : vector<16x64xf32> to vector<16xf32>
    %24 = vector.shape_cast %23 : vector<16xf32> to vector<16x1xf32>
    %cst_14 = arith.constant 6.400000e+01 : f32
    %25 = vector.broadcast %cst_14 : f32 to vector<16x1xf32>
    %26 = arith.divf %24, %25 : vector<16x1xf32>
    %27 = vector.broadcast %19 : vector<16x1xf32> to vector<16x64xf32>
    %28 = arith.subf %15, %27 : vector<16x64xf32>
    %cst_15 = arith.constant 9.99999974E-6 : f32
    %29 = vector.broadcast %cst_15 : f32 to vector<16x1xf32>
    %30 = arith.addf %26, %29 : vector<16x1xf32>
    %31 = math.rsqrt %30 : vector<16x1xf32>
    %32 = vector.broadcast %31 : vector<16x1xf32> to vector<16x64xf32>
    %33 = arith.mulf %28, %32 : vector<16x64xf32>
    %c0_16 = arith.constant 0 : index
    %c0_17 = arith.constant 0 : index
    %34 = vector.load %arg6[%c0_16, %c0_17] : memref<1x64xf32, #tpu.memory_space<vmem>>, vector<1x64xf32>
    %35 = vector.broadcast %34 : vector<1x64xf32> to vector<16x64xf32>
    %36 = arith.mulf %33, %35 : vector<16x64xf32>
    %c0_18 = arith.constant 0 : index
    %c0_19 = arith.constant 0 : index
    %37 = vector.load %arg7[%c0_18, %c0_19] : memref<1x64xf32, #tpu.memory_space<vmem>>, vector<1x64xf32>
    %38 = vector.broadcast %37 : vector<1x64xf32> to vector<16x64xf32>
    %39 = arith.addf %36, %38 : vector<16x64xf32>
    %c0_20 = arith.constant 0 : index
    %c0_21 = arith.constant 0 : index
    %40 = vector.load %arg8[%c0_20, %c0_21] : memref<16x64xf32, #tpu.memory_space<vmem>>, vector<16x64xf32>
    tpu.vector_store %arg8[%c0_20, %c0_21], %39 {strides = array<i32>} : memref<16x64xf32, #tpu.memory_space<vmem>>, vector<16x64xf32>,
    return
  }
  func.func @transform_0(%arg0: i32) -> (i32, i32) {
    %c0_i32 = arith.constant 0 : i32
    %c0_i32_0 = arith.constant 0 : i32
    return %arg0, %c0_i32 : i32, i32
  }
  func.func @transform_1(%arg0: i32) -> (i32, i32) {
    %c0_i32 = arith.constant 0 : i32
    %c0_i32_0 = arith.constant 0 : i32
    %c0_i32_1 = arith.constant 0 : i32
    return %c0_i32, %c0_i32_0 : i32, i32
  }
  func.func @transform_2(%arg0: i32) -> (i32, i32) {
    %c0_i32 = arith.constant 0 : i32
    %c0_i32_0 = arith.constant 0 : i32
    %c0_i32_1 = arith.constant 0 : i32
    return %c0_i32, %c0_i32_0 : i32, i32
  }
  func.func @transform_3(%arg0: i32) -> (i32, i32) {
    %c0_i32 = arith.constant 0 : i32
    %c0_i32_0 = arith.constant 0 : i32
    %c0_i32_1 = arith.constant 0 : i32
    return %c0_i32, %c0_i32_0 : i32, i32
  }
  func.func @transform_4(%arg0: i32) -> (i32, i32) {
    %c0_i32 = arith.constant 0 : i32
    %c0_i32_0 = arith.constant 0 : i32
    %c0_i32_1 = arith.constant 0 : i32
    return %c0_i32, %c0_i32_0 : i32, i32
  }
  func.func @transform_5(%arg0: i32) -> (i32, i32) {
    %c0_i32 = arith.constant 0 : i32
    %c0_i32_0 = arith.constant 0 : i32
    %c0_i32_1 = arith.constant 0 : i32
    return %c0_i32, %c0_i32_0 : i32, i32
  }
  func.func @transform_6(%arg0: i32) -> (i32, i32) {
    %c0_i32 = arith.constant 0 : i32
    %c0_i32_0 = arith.constant 0 : i32
    %c0_i32_1 = arith.constant 0 : i32
    return %c0_i32, %c0_i32_0 : i32, i32
  }
  func.func @transform_7(%arg0: i32) -> (i32, i32) {
    %c0_i32 = arith.constant 0 : i32
    %c0_i32_0 = arith.constant 0 : i32
    return %arg0, %c0_i32 : i32, i32
  }
}

module attributes {stable_mosaic.version = 11 : i64} {
  func.func @_linear_kernel(%arg0: i32, %arg1: memref<16x64xf32, #tpu.memory_space<vmem>>, %arg2: memref<64x128xbf16, #tpu.memory_space<vmem>>, %arg3: memref<1x128xf32, #tpu.memory_space<vmem>>, %arg4: memref<16x128xf32, #tpu.memory_space<vmem>>) attributes {dimension_semantics = [#tpu.dimension_semantics<parallel>], iteration_bounds = array<i64: 1>, scalar_prefetch = 0 : i64, scratch_operands = 0 : i64, tpu.core_type = #tpu.core_type<tc>, window_params = [{transform_indices = @transform_0, window_bounds = array<i64: 16, 64>}, {pipeline_mode = #tpu.pipeline_mode<synchronous>, transform_indices = @transform_1, window_bounds = array<i64: 64, 128>}, {pipeline_mode = #tpu.pipeline_mode<synchronous>, transform_indices = @transform_2, window_bounds = array<i64: 1, 128>}, {transform_indices = @transform_3, window_bounds = array<i64: 16, 128>}]} {
    %c0 = arith.constant 0 : index
    %c0_0 = arith.constant 0 : index
    %0 = vector.load %arg1[%c0, %c0_0] : memref<16x64xf32, #tpu.memory_space<vmem>>, vector<16x64xf32>
    %1 = arith.truncf %0 : vector<16x64xf32> to vector<16x64xbf16>
    %c0_1 = arith.constant 0 : index
    %c0_2 = arith.constant 0 : index
    %2 = vector.load %arg2[%c0_1, %c0_2] : memref<64x128xbf16, #tpu.memory_space<vmem>>, vector<64x128xbf16>
    %cst = arith.constant dense<0.000000e+00> : vector<16x128xf32>
    %3 = tpu.matmul %1, %2, %cst {dimension_numbers = #tpu.dot_dimension_numbers<[1], [0], [0], [1], [0, 0, 1, 1], [], []>} : vector<16x64xbf16>, vector<64x128xbf16>, vector<16x128xf32> -> vector<16x128xf32>
    %c0_3 = arith.constant 0 : index
    %c0_4 = arith.constant 0 : index
    %4 = vector.load %arg3[%c0_3, %c0_4] : memref<1x128xf32, #tpu.memory_space<vmem>>, vector<1x128xf32>
    %5 = vector.broadcast %4 : vector<1x128xf32> to vector<16x128xf32>
    %6 = arith.addf %3, %5 : vector<16x128xf32>
    %c0_5 = arith.constant 0 : index
    %c0_6 = arith.constant 0 : index
    %7 = vector.load %arg4[%c0_5, %c0_6] : memref<16x128xf32, #tpu.memory_space<vmem>>, vector<16x128xf32>
    tpu.vector_store %arg4[%c0_5, %c0_6], %6 {strides = array<i32>} : memref<16x128xf32, #tpu.memory_space<vmem>>, vector<16x128xf32>,
    return
  }
  func.func @transform_0(%arg0: i32) -> (i32, i32) {
    %c0_i32 = arith.constant 0 : i32
    %c0_i32_0 = arith.constant 0 : i32
    return %arg0, %c0_i32 : i32, i32
  }
  func.func @transform_1(%arg0: i32) -> (i32, i32) {
    %c0_i32 = arith.constant 0 : i32
    %c0_i32_0 = arith.constant 0 : i32
    %c0_i32_1 = arith.constant 0 : i32
    return %c0_i32, %c0_i32_0 : i32, i32
  }
  func.func @transform_2(%arg0: i32) -> (i32, i32) {
    %c0_i32 = arith.constant 0 : i32
    %c0_i32_0 = arith.constant 0 : i32
    %c0_i32_1 = arith.constant 0 : i32
    return %c0_i32, %c0_i32_0 : i32, i32
  }
  func.func @transform_3(%arg0: i32) -> (i32, i32) {
    %c0_i32 = arith.constant 0 : i32
    %c0_i32_0 = arith.constant 0 : i32
    return %arg0, %c0_i32 : i32, i32
  }
}

</mosaic_0001>

<llo_original>
// kernel: decoder_forward.13
$region0: #{decoder_forward.13}
  #allocation0 [shape = 'u32[]', space=smem, size = 0x4, offset = 0x4, fixed_abs, tag = 'smem constant byte address 0x4 - core index']
  #allocation1 [shape = 'u32[144,128]{1,0:T(1,128)}', space=vmem, size = 0x12000, scoped, tag = 'internal scratch']
  %s0 = inlined_call_operand.vmem [shape: f32[16,64], index: 0, kind: input, shape index: {}]
  %s1 = inlined_call_operand.vmem [shape: bf16[64,128], index: 1, kind: input, shape index: {}]
  %s2 = inlined_call_operand.vmem [shape: f32[1,128], index: 2, kind: input, shape index: {}]
  %s3 = inlined_call_operand.vmem [shape: f32[16,128], index: 3, kind: output, shape index: {}]
  %s4 = sld [smem:[#allocation0]]
  $region22: #{decoder_forward.13} parent=0
    _
  %s6 = ssub.s32 1, %s4
  %s7 = scalar_select 0, %s6, %s4
  // Predicated region
  $region2: #{decoder_forward.13} parent=0 // pred_check
    _
  $region3: #{decoder_forward.13} parent=0 // pred_check_branch
    %9 = sbr.rel (0) target = $region5
  $region4: #{decoder_forward.13} parent=0 // pred_region
    _
  $region5: #{decoder_forward.13} parent=0 // pred_fallthru
    _
  // Predicated region
  $region6: #{decoder_forward.13} parent=0 // pred_check
    _
  $region7: #{decoder_forward.13} parent=0 // pred_check_branch
    %11 = sbr.rel (0) target = $region9
  $region8: #{decoder_forward.13} parent=0 // pred_region
    _
  $region9: #{decoder_forward.13} parent=0 // pred_fallthru
    _
  // Predicated region
  $region10: #{decoder_forward.13} parent=0 // pred_check
    _
  $region11: #{decoder_forward.13} parent=0 // pred_check_branch
    %13 = sbr.rel (0) target = $region13
  $region12: #{decoder_forward.13} parent=0 // pred_region
    _
  $region13: #{decoder_forward.13} parent=0 // pred_fallthru
    _
  %v15 = vld [vmem:[%s0] sm:$0xff]
  %v16 = vld [vmem:[%s0 + $0x8] sm:$0xff]
  %v17 = vpack.c.bf16 %v16, %v15
  %v18 = vld [vmem:[%s1] sm:$0xf]
  %v19 = vld [vmem:[%s1 + $0x4] sm:$0xf]
  %v20 = vld [vmem:[%s1 + $0x8] sm:$0xf]
  %v21 = vld [vmem:[%s1 + $0xc] sm:$0xf]
  %v22 = vld [vmem:[%s1 + $0x10] sm:$0xf]
  %v23 = vld [vmem:[%s1 + $0x14] sm:$0xf]
  %v24 = vld [vmem:[%s1 + $0x18] sm:$0xf]
  %v25 = vld [vmem:[%s1 + $0x1c] sm:$0xf]
  %v26 = vld [vmem:[%s2] sm:$0x1]
  %v28 = vlaneseq
  %v29 = vshrl.u32 %v28, 7
  %v30 = vsub.s32 0, %v29
  %v31 = vrot.slane %v26, %v30
  %v41 = vunpack.c.l.b16 %v18
  %v42 = vunpack.c.l.b16 %v19
  %v43 = vunpack.c.l.b16 %v20
  %v44 = vunpack.c.l.b16 %v21
  %v45 = vunpack.c.l.b16 %v22
  %v46 = vunpack.c.l.b16 %v23
  %v47 = vunpack.c.l.b16 %v24
  %v48 = vunpack.c.l.b16 %v25
  %v49 = vpack.c.b16 %v42, %v41
  %v50 = vpack.c.b16 %v44, %v43
  %v51 = vpack.c.b16 %v46, %v45
  %v52 = vpack.c.b16 %v48, %v47
  %vm57 = vcmask 523264
  %v59 = vsel %vm57, %v17, 0
  %61 = vmatprep.subr.bf16.mxu0 0
  %62 = vmatpush1.bf16.msra.mxu0 %v49
  %63 = vmatprep.subr.bf16.mxu0 0
  %64 = vmatpush1.bf16.msra.mxu0 %v50
  %65 = vmatprep.subr.bf16.mxu0 0
  %66 = vmatpush1.bf16.msra.mxu0 %v51
  %67 = vmatprep.subr.bf16.mxu0 0
  %68 = vmatpush1.bf16.msra.mxu0 %v52
  %69 = vmatprep.subr.bf16.mxu0 0
  %70 = vmatpush1.bf16.msra.mxu0 0
  %71 = vmatprep.subr.bf16.mxu0 0
  %72 = vmatpush1.bf16.msra.mxu0 0
  %73 = vmatprep.subr.bf16.mxu0 0
  %74 = vmatpush1.bf16.msra.mxu0 0
  %75 = vmatprep.subr.bf16.mxu0 0
  %76 = vmatpush1.bf16.msra.mxu0 0
  %77 = vmatprep.subr.bf16.mxu0 0
  %78 = vmatpush1.bf16.msra.mxu0 0
  %79 = vmatprep.subr.bf16.mxu0 0
  %80 = vmatpush1.bf16.msra.mxu0 0
  %81 = vmatprep.subr.bf16.mxu0 0
  %82 = vmatpush1.bf16.msra.mxu0 0
  %83 = vmatprep.subr.bf16.mxu0 0
  %84 = vmatpush1.bf16.msra.mxu0 0
  %85 = vmatprep.subr.bf16.mxu0 0
  %86 = vmatpush1.bf16.msra.mxu0 0
  %87 = vmatprep.subr.bf16.mxu0 0
  %88 = vmatpush1.bf16.msra.mxu0 0
  %89 = vmatprep.subr.bf16.mxu0 0
  %90 = vmatpush1.bf16.msra.mxu0 0
  %91 = vmatprep.subr.bf16.mxu0 0
  %92 = vmatpush1.bf16.msra.mxu0 0
  %93 = vmatprep.mubr.bf16.mxu0 0
  %94 = vmatmul.mubr.bf16.gmra.mrb[0].mxu0 %v59
  %v95 = vpop.f32.mrb[0].mxu0
  %v96 = vadd.f32 %v31, %v95
  %v97 = vpop.f32.mrb[0].mxu0
  %v98 = vpop.f32.mrb[0].mxu0
  %v99 = vadd.f32 %v31, %v98
  %v100 = vpop.f32.mrb[0].mxu0
  %101 = vdwg.mxu0
  %102 = vst [vmem:[%s3] sm:$0xff] %v96
  %103 = vst [vmem:[%s3 + $0x8] sm:$0xff] %v99
  // Predicated region
  $region14: #{decoder_forward.13} parent=0 // pred_check
    _
  $region15: #{decoder_forward.13} parent=0 // pred_check_branch
    %105 = sbr.rel (0) target = $region17
  $region16: #{decoder_forward.13} parent=0 // pred_region
    _
  $region17: #{decoder_forward.13} parent=0 // pred_fallthru
    _
  // Predicated region
  $region18: #{decoder_forward.13} parent=0 // pred_check
    _
  $region19: #{decoder_forward.13} parent=0 // pred_check_branch
    %107 = sbr.rel (0) target = $region21
  $region20: #{decoder_forward.13} parent=0 // pred_region
    _
  $region21: #{decoder_forward.13} parent=0 // pred_fallthru
    _

// kernel: decoder_forward.9
$region0: #{decoder_forward.9}
  #allocation0 [shape = 'u32[]', space=smem, size = 0x4, offset = 0x4, fixed_abs, tag = 'smem constant byte address 0x4 - core index']
  #allocation1 [shape = 'u32[144,128]{1,0:T(1,128)}', space=vmem, size = 0x12000, scoped, tag = 'internal scratch']
  %s0 = inlined_call_operand.vmem [shape: f32[16,64], index: 0, kind: input, shape index: {}]
  %s1 = inlined_call_operand.vmem [shape: bf16[64,128], index: 1, kind: input, shape index: {}]
  %s2 = inlined_call_operand.vmem [shape: f32[1,128], index: 2, kind: input, shape index: {}]
  %s3 = inlined_call_operand.vmem [shape: bf16[128,64], index: 3, kind: input, shape index: {}]
  %s4 = inlined_call_operand.vmem [shape: f32[1,64], index: 4, kind: input, shape index: {}]
  %s5 = inlined_call_operand.vmem [shape: f32[1,64], index: 5, kind: input, shape index: {}]
  %s6 = inlined_call_operand.vmem [shape: f32[1,64], index: 6, kind: input, shape index: {}]
  %s7 = inlined_call_operand.vmem [shape: f32[16,64], index: 7, kind: output, shape index: {}]
  %s8 = sld [smem:[#allocation0]]
  $region38: #{decoder_forward.9} parent=0
    _
  %s10 = ssub.s32 1, %s8
  %s11 = scalar_select 0, %s10, %s8
  // Predicated region
  $region2: #{decoder_forward.9} parent=0 // pred_check
    _
  $region3: #{decoder_forward.9} parent=0 // pred_check_branch
    %13 = sbr.rel (0) target = $region5
  $region4: #{decoder_forward.9} parent=0 // pred_region
    _
  $region5: #{decoder_forward.9} parent=0 // pred_fallthru
    _
  // Predicated region
  $region6: #{decoder_forward.9} parent=0 // pred_check
    _
  $region7: #{decoder_forward.9} parent=0 // pred_check_branch
    %15 = sbr.rel (0) target = $region9
  $region8: #{decoder_forward.9} parent=0 // pred_region
    _
  $region9: #{decoder_forward.9} parent=0 // pred_fallthru
    _
  // Predicated region
  $region10: #{decoder_forward.9} parent=0 // pred_check
    _
  $region11: #{decoder_forward.9} parent=0 // pred_check_branch
    %17 = sbr.rel (0) target = $region13
  $region12: #{decoder_forward.9} parent=0 // pred_region
    _
  $region13: #{decoder_forward.9} parent=0 // pred_fallthru
    _
  // Predicated region
  $region14: #{decoder_forward.9} parent=0 // pred_check
    _
  $region15: #{decoder_forward.9} parent=0 // pred_check_branch
    %19 = sbr.rel (0) target = $region17
  $region16: #{decoder_forward.9} parent=0 // pred_region
    _
  $region17: #{decoder_forward.9} parent=0 // pred_fallthru
    _
  // Predicated region
  $region18: #{decoder_forward.9} parent=0 // pred_check
    _
  $region19: #{decoder_forward.9} parent=0 // pred_check_branch
    %21 = sbr.rel (0) target = $region21
  $region20: #{decoder_forward.9} parent=0 // pred_region
    _
  $region21: #{decoder_forward.9} parent=0 // pred_fallthru
    _
  // Predicated region
  $region22: #{decoder_forward.9} parent=0 // pred_check
    _
  $region23: #{decoder_forward.9} parent=0 // pred_check_branch
    %23 = sbr.rel (0) target = $region25
  $region24: #{decoder_forward.9} parent=0 // pred_region
    _
  $region25: #{decoder_forward.9} parent=0 // pred_fallthru
    _
  // Predicated region
  $region26: #{decoder_forward.9} parent=0 // pred_check
    _
  $region27: #{decoder_forward.9} parent=0 // pred_check_branch
    %25 = sbr.rel (0) target = $region29
  $region28: #{decoder_forward.9} parent=0 // pred_region
    _
  $region29: #{decoder_forward.9} parent=0 // pred_fallthru
    _
  %v27 = vld [vmem:[%s0] sm:$0xff]
  %v28 = vld [vmem:[%s0 + $0x8] sm:$0xff]
  %v29 = vpack.c.bf16 %v28, %v27
  %v30 = vld [vmem:[%s1] sm:$0xf]
  %v31 = vld [vmem:[%s1 + $0x4] sm:$0xf]
  %v32 = vld [vmem:[%s1 + $0x8] sm:$0xf]
  %v33 = vld [vmem:[%s1 + $0xc] sm:$0xf]
  %v34 = vld [vmem:[%s1 + $0x10] sm:$0xf]
  %v35 = vld [vmem:[%s1 + $0x14] sm:$0xf]
  %v36 = vld [vmem:[%s1 + $0x18] sm:$0xf]
  %v37 = vld [vmem:[%s1 + $0x1c] sm:$0xf]
  %v38 = vld [vmem:[%s2] sm:$0x1]
  %v40 = vlaneseq
  %v41 = vshrl.u32 %v40, 7
  %v42 = vsub.s32 0, %v41
  %v43 = vrot.slane %v38, %v42
  %v53 = vunpack.c.l.b16 %v30
  %v54 = vunpack.c.l.b16 %v31
  %v55 = vunpack.c.l.b16 %v32
  %v56 = vunpack.c.l.b16 %v33
  %v57 = vunpack.c.l.b16 %v34
  %v58 = vunpack.c.l.b16 %v35
  %v59 = vunpack.c.l.b16 %v36
  %v60 = vunpack.c.l.b16 %v37
  %v61 = vpack.c.b16 %v54, %v53
  %v62 = vpack.c.b16 %v56, %v55
  %v63 = vpack.c.b16 %v58, %v57
  %v64 = vpack.c.b16 %v60, %v59
  %vm69 = vcmask 523264
  %v71 = vsel %vm69, %v29, 0
  %73 = vmatprep.subr.bf16.mxu0 0
  %74 = vmatpush1.bf16.msra.mxu0 %v61
  %75 = vmatprep.subr.bf16.mxu0 0
  %76 = vmatpush1.bf16.msra.mxu0 %v62
  %77 = vmatprep.subr.bf16.mxu0 0
  %78 = vmatpush1.bf16.msra.mxu0 %v63
  %79 = vmatprep.subr.bf16.mxu0 0
  %80 = vmatpush1.bf16.msra.mxu0 %v64
  %81 = vmatprep.subr.bf16.mxu0 0
  %82 = vmatpush1.bf16.msra.mxu0 0
  %83 = vmatprep.subr.bf16.mxu0 0
  %84 = vmatpush1.bf16.msra.mxu0 0
  %85 = vmatprep.subr.bf16.mxu0 0
  %86 = vmatpush1.bf16.msra.mxu0 0
  %87 = vmatprep.subr.bf16.mxu0 0
  %88 = vmatpush1.bf16.msra.mxu0 0
  %89 = vmatprep.subr.bf16.mxu0 0
  %90 = vmatpush1.bf16.msra.mxu0 0
  %91 = vmatprep.subr.bf16.mxu0 0
  %92 = vmatpush1.bf16.msra.mxu0 0
  %93 = vmatprep.subr.bf16.mxu0 0
  %94 = vmatpush1.bf16.msra.mxu0 0
  %95 = vmatprep.subr.bf16.mxu0 0
  %96 = vmatpush1.bf16.msra.mxu0 0
  %97 = vmatprep.subr.bf16.mxu0 0
  %98 = vmatpush1.bf16.msra.mxu0 0
  %99 = vmatprep.subr.bf16.mxu0 0
  %100 = vmatpush1.bf16.msra.mxu0 0
  %101 = vmatprep.subr.bf16.mxu0 0
  %102 = vmatpush1.bf16.msra.mxu0 0
  %103 = vmatprep.subr.bf16.mxu0 0
  %104 = vmatpush1.bf16.msra.mxu0 0
  %105 = vmatprep.mubr.bf16.mxu0 0
  %106 = vmatmul.mubr.bf16.gmra.mrb[0].mxu0 %v71
  %v107 = vpop.f32.mrb[0].mxu0
  %v108 = vadd.f32 %v43, %v107
  %v109 = vpop.f32.mrb[0].mxu0
  %v110 = vpop.f32.mrb[0].mxu0
  %v111 = vadd.f32 %v43, %v110
  %v112 = vpop.f32.mrb[0].mxu0
  %113 = vdwg.mxu0
  %v114 = vmax.f32 %v108, 0.0
  %v115 = vmax.f32 %v111, 0.0
  %v116 = vpack.c.bf16 %v115, %v114
  %v117 = vld [vmem:[%s3] sm:$0xf]
  %v118 = vld [vmem:[%s3 + $0x4] sm:$0xf]
  %v119 = vld [vmem:[%s3 + $0x8] sm:$0xf]
  %v120 = vld [vmem:[%s3 + $0xc] sm:$0xf]
  %v121 = vld [vmem:[%s3 + $0x10] sm:$0xf]
  %v122 = vld [vmem:[%s3 + $0x14] sm:$0xf]
  %v123 = vld [vmem:[%s3 + $0x18] sm:$0xf]
  %v124 = vld [vmem:[%s3 + $0x1c] sm:$0xf]
  %v125 = vld [vmem:[%s3 + $0x20] sm:$0xf]
  %v126 = vld [vmem:[%s3 + $0x24] sm:$0xf]
  %v127 = vld [vmem:[%s3 + $0x28] sm:$0xf]
  %v128 = vld [vmem:[%s3 + $0x2c] sm:$0xf]
  %v129 = vld [vmem:[%s3 + $0x30] sm:$0xf]
  %v130 = vld [vmem:[%s3 + $0x34] sm:$0xf]
  %v131 = vld [vmem:[%s3 + $0x38] sm:$0xf]
  %v132 = vld [vmem:[%s3 + $0x3c] sm:$0xf]
  %v133 = vld [vmem:[%s4] sm:$0x1]
  %v135 = vlaneseq
  %v136 = vshrl.u32 %v135, 7
  %v137 = vsub.s32 0, %v136
  %v138 = vrot.slane %v133, %v137
  %v156 = vunpack.c.l.b16 %v117
  %v157 = vunpack.c.l.b16 %v118
  %v158 = vunpack.c.l.b16 %v119
  %v159 = vunpack.c.l.b16 %v120
  %v160 = vunpack.c.l.b16 %v121
  %v161 = vunpack.c.l.b16 %v122
  %v162 = vunpack.c.l.b16 %v123
  %v163 = vunpack.c.l.b16 %v124
  %v164 = vunpack.c.l.b16 %v125
  %v165 = vunpack.c.l.b16 %v126
  %v166 = vunpack.c.l.b16 %v127
  %v167 = vunpack.c.l.b16 %v128
  %v168 = vunpack.c.l.b16 %v129
  %v169 = vunpack.c.l.b16 %v130
  %v170 = vunpack.c.l.b16 %v131
  %v171 = vunpack.c.l.b16 %v132
  %v172 = vpack.c.b16 %v157, %v156
  %v173 = vpack.c.b16 %v159, %v158
  %v174 = vpack.c.b16 %v161, %v160
  %v175 = vpack.c.b16 %v163, %v162
  %v176 = vpack.c.b16 %v165, %v164
  %v177 = vpack.c.b16 %v167, %v166
  %v178 = vpack.c.b16 %v169, %v168
  %v179 = vpack.c.b16 %v171, %v170
  %188 = vmatprep.subr.bf16.mxu0 0
  %189 = vmatpush1.bf16.msra.mxu0 %v172
  %190 = vmatprep.subr.bf16.mxu0 0
  %191 = vmatpush1.bf16.msra.mxu0 %v173
  %192 = vmatprep.subr.bf16.mxu0 0
  %193 = vmatpush1.bf16.msra.mxu0 %v174
  %194 = vmatprep.subr.bf16.mxu0 0
  %195 = vmatpush1.bf16.msra.mxu0 %v175
  %196 = vmatprep.subr.bf16.mxu0 0
  %197 = vmatpush1.bf16.msra.mxu0 %v176
  %198 = vmatprep.subr.bf16.mxu0 0
  %199 = vmatpush1.bf16.msra.mxu0 %v177
  %200 = vmatprep.subr.bf16.mxu0 0
  %201 = vmatpush1.bf16.msra.mxu0 %v178
  %202 = vmatprep.subr.bf16.mxu0 0
  %203 = vmatpush1.bf16.msra.mxu0 %v179
  %204 = vmatprep.subr.bf16.mxu0 0
  %205 = vmatpush1.bf16.msra.mxu0 0
  %206 = vmatprep.subr.bf16.mxu0 0
  %207 = vmatpush1.bf16.msra.mxu0 0
  %208 = vmatprep.subr.bf16.mxu0 0
  %209 = vmatpush1.bf16.msra.mxu0 0
  %210 = vmatprep.subr.bf16.mxu0 0
  %211 = vmatpush1.bf16.msra.mxu0 0
  %212 = vmatprep.subr.bf16.mxu0 0
  %213 = vmatpush1.bf16.msra.mxu0 0
  %214 = vmatprep.subr.bf16.mxu0 0
  %215 = vmatpush1.bf16.msra.mxu0 0
  %216 = vmatprep.subr.bf16.mxu0 0
  %217 = vmatpush1.bf16.msra.mxu0 0
  %218 = vmatprep.subr.bf16.mxu0 0
  %219 = vmatpush1.bf16.msra.mxu0 0
  %220 = vmatprep.mubr.bf16.mxu0 0
  %221 = vmatmul.mubr.bf16.gmra.mrb[0].mxu0 %v116
  %v222 = vpop.f32.mrb[0].mxu0
  %v223 = vadd.f32 %v138, %v222
  %v224 = vpop.f32.mrb[0].mxu0
  %v225 = vpop.f32.mrb[0].mxu0
  %v226 = vadd.f32 %v138, %v225
  %v227 = vpop.f32.mrb[0].mxu0
  %228 = vdwg.mxu0
  %v229 = vadd.f32 %v27, %v223
  %v230 = vadd.f32 %v28, %v226
  %v231 = vsel %vm69, %v229, 0.0
  %232 = vadd.xlane.f32.xlu0 %v231
  %v233 = vpop.xlane.xlu0 %232
  %v234 = vsel %vm69, %v230, 0.0
  %235 = vadd.xlane.f32.xlu0 %v234
  %v236 = vpop.xlane.xlu0 %235
  %v237 = vrcp.pop 64.0
  %v238 = vmul.f32 %v233, %v237
  %v239 = vmul.f32 %v236, %v237
  %v240 = vsub.f32 %v229, %v238
  %v241 = vsub.f32 %v230, %v239
  %v242 = vmul.f32 %v240, %v240
  %v243 = vmul.f32 %v241, %v241
  %v244 = vsel %vm69, %v242, 0.0
  %245 = vadd.xlane.f32.xlu0 %v244
  %v246 = vpop.xlane.xlu0 %245
  %v247 = vsel %vm69, %v243, 0.0
  %248 = vadd.xlane.f32.xlu0 %v247
  %v249 = vpop.xlane.xlu0 %248
  %v250 = vmul.f32 %v246, %v237
  %v251 = vmul.f32 %v249, %v237
  %v252 = vadd.f32 %v250, 1e-05
  %v253 = vadd.f32 %v251, 1e-05
  %v254 = vrsqrt.pop %v252
  %v255 = vrsqrt.pop %v253
  %v256 = vmul.f32 %v240, %v254
  %v257 = vmul.f32 %v241, %v255
  %v258 = vld [vmem:[%s5] sm:$0x1]
  %v260 = vlaneseq
  %v261 = vshrl.u32 %v260, 7
  %v262 = vsub.s32 0, %v261
  %v263 = vrot.slane %v258, %v262
  %v265 = vmul.f32 %v256, %v263
  %v266 = vmul.f32 %v257, %v263
  %v267 = vld [vmem:[%s6] sm:$0x1]
  %v269 = vlaneseq
  %v270 = vshrl.u32 %v269, 7
  %v271 = vsub.s32 0, %v270
  %v272 = vrot.slane %v267, %v271
  %v274 = vadd.f32 %v265, %v272
  %v275 = vadd.f32 %v266, %v272
  %276 = vst.msk [vmem:[%s7] sm:$0xff] %vm69, %v274
  %277 = vst.msk [vmem:[%s7 + $0x8] sm:$0xff] %vm69, %v275
  // Predicated region
  $region30: #{decoder_forward.9} parent=0 // pred_check
    _
  $region31: #{decoder_forward.9} parent=0 // pred_check_branch
    %279 = sbr.rel (0) target = $region33
  $region32: #{decoder_forward.9} parent=0 // pred_region
    _
  $region33: #{decoder_forward.9} parent=0 // pred_fallthru
    _
  // Predicated region
  $region34: #{decoder_forward.9} parent=0 // pred_check
    _
  $region35: #{decoder_forward.9} parent=0 // pred_check_branch
    %281 = sbr.rel (0) target = $region37
  $region36: #{decoder_forward.9} parent=0 // pred_region
    _
  $region37: #{decoder_forward.9} parent=0 // pred_fallthru
    _

// kernel: decoder_forward.7
$region0: #{decoder_forward.7}
  #allocation0 [shape = 'u32[]', space=smem, size = 0x4, offset = 0x4, fixed_abs, tag = 'smem constant byte address 0x4 - core index']
  #allocation1 [shape = 'u32[144,128]{1,0:T(1,128)}', space=vmem, size = 0x12000, scoped, tag = 'internal scratch']
  %s0 = inlined_call_operand.vmem [shape: f32[2,8,64], index: 0, kind: input, shape index: {}, may-alias: {0,1,2}]
  %s1 = inlined_call_operand.vmem [shape: f32[2,8,64], index: 1, kind: input, shape index: {}, may-alias: {0,1,2}]
  %s2 = inlined_call_operand.vmem [shape: f32[2,8,64], index: 2, kind: input, shape index: {}, may-alias: {0,1,2}]
  %s3 = inlined_call_operand.vmem [shape: f32[2,8,8], index: 3, kind: input, shape index: {}]
  %s4 = inlined_call_operand.vmem [shape: bf16[64,64], index: 4, kind: input, shape index: {}]
  %s5 = inlined_call_operand.vmem [shape: f32[1,64], index: 5, kind: input, shape index: {}]
  %s6 = inlined_call_operand.vmem [shape: bf16[64,64], index: 6, kind: input, shape index: {}]
  %s7 = inlined_call_operand.vmem [shape: f32[1,64], index: 7, kind: input, shape index: {}]
  %s8 = inlined_call_operand.vmem [shape: bf16[64,64], index: 8, kind: input, shape index: {}]
  %s9 = inlined_call_operand.vmem [shape: f32[1,64], index: 9, kind: input, shape index: {}]
  %s10 = inlined_call_operand.vmem [shape: bf16[64,64], index: 10, kind: input, shape index: {}]
  %s11 = inlined_call_operand.vmem [shape: f32[1,64], index: 11, kind: input, shape index: {}]
  %s12 = inlined_call_operand.vmem [shape: f32[1,64], index: 12, kind: input, shape index: {}]
  %s13 = inlined_call_operand.vmem [shape: f32[1,64], index: 13, kind: input, shape index: {}]
  %s14 = inlined_call_operand.vmem [shape: f32[2,8,64], index: 14, kind: output, shape index: {}]
  %s15 = sld [smem:[#allocation0]]
  $region89: #{decoder_forward.7} parent=0
    _
  %s17 = ssub.s32 1, %s15
  %s18 = scalar_select 0, %s17, %s15
  loop: start=0, step=1, limit=4
  $region2: #{decoder_forward.7} parent=0 // loop_pre_header
    _
  $region3: #{decoder_forward.7} parent=0 // loop_header
    %s20 = sphi 0, %s24
    %p21 = scmp.ge.s32.totalorder %s20, 4
    %s30 = sphi 0, %s32
    %s33 = sphi 0, %s30
    %s34 = sphi 0, %s33
    %s50 = sphi 0, %s34
    %s56 = sphi 0, %s58
    %s59 = sphi 0, %s56
    %s60 = sphi 0, %s59
    %s76 = sphi 0, %s60
    %s82 = sphi 0, %s84
    %s85 = sphi 0, %s82
    %s86 = sphi 0, %s85
    %s102 = sphi 0, %s86
    %s108 = sphi 0, %s110
    %s111 = sphi 0, %s108
    %s112 = sphi 0, %s111
    %s128 = sphi 0, %s112
    %s132 = sphi 0, %s132
    %s134 = sphi 0, %s132
    %s135 = sphi 0, %s134
    %s149 = sphi 0, %s135
    %s153 = sphi 0, %s153
    %s155 = sphi 0, %s153
    %s156 = sphi 0, %s155
    %s170 = sphi 0, %s156
    %s174 = sphi 0, %s174
    %s176 = sphi 0, %s174
    %s177 = sphi 0, %s176
    %s191 = sphi 0, %s177
    %s195 = sphi 0, %s195
    %s197 = sphi 0, %s195
    %s198 = sphi 0, %s197
    %s212 = sphi 0, %s198
    %s216 = sphi 0, %s216
    %s218 = sphi 0, %s216
    %s219 = sphi 0, %s218
    %s233 = sphi 0, %s219
    %s237 = sphi 0, %s237
    %s239 = sphi 0, %s237
    %s240 = sphi 0, %s239
    %s254 = sphi 0, %s240
    %s258 = sphi 0, %s258
    %s260 = sphi 0, %s258
    %s261 = sphi 0, %s260
    %s275 = sphi 0, %s261
    %s279 = sphi 0, %s279
    %s281 = sphi 0, %s279
    %s282 = sphi 0, %s281
    %s296 = sphi 0, %s282
    %s300 = sphi 0, %s300
    %s302 = sphi 0, %s300
    %s303 = sphi 0, %s302
    %s317 = sphi 0, %s303
    %s321 = sphi 0, %s321
    %s323 = sphi 0, %s321
    %s324 = sphi 0, %s323
    %s338 = sphi 0, %s324
    %s344 = sphi 0, %s346
    %s347 = sphi 0, %s344
    %s348 = sphi 0, %s347
    %s364 = sphi 0, %s348
  $region4: #{decoder_forward.7} parent=0 // loop_header_branch
    %23 = sbr.rel (%p21) target = $region8
  $region5: #{decoder_forward.7} parent=0 // loop_body
    %s25 = ssub.s32 %s20, 1
    %s26 = ssub.s32 %s20, 2
    %s27 = sadd.s32 %s20, 1
    %s28 = ssub.s32 %s20, %s27
    %p29 = scmp.eq.s32.totalorder %s28, 0
    %s31 = sadd.s32 %s30, 1
    %s32 = scalar_select %p29, %s30, %s31
    %p35 = pneg %p29
    %p36 = scmp.eq.s32.totalorder %s20, 1
    %p37 = por %p35, %p36
    %p38 = scmp.ne.s32.totalorder %s30, %s33
    %p39 = scmp.eq.s32.totalorder %s20, 0
    %p40 = por %p38, %p39
    %p41 = scmp.ne.s32.totalorder %s30, %s33
    %p42 = scmp.eq.s32.totalorder %s25, 1
    %p43 = por %p41, %p42
    %p44 = scmp.ne.s32.totalorder %s33, %s34
    %p45 = scmp.eq.s32.totalorder %s25, 0
    %p46 = por %p44, %p45
    %p47 = scmp.ne.s32.totalorder %s33, %s34
    %p48 = scmp.eq.s32.totalorder %s26, 1
    %p49 = por %p47, %p48
    %p51 = scmp.ne.s32.totalorder %s34, %s50
    %p52 = scmp.eq.s32.totalorder %s26, 0
    %p53 = por %p51, %p52
    %s54 = ssub.s32 %s20, %s27
    %p55 = scmp.eq.s32.totalorder %s54, 0
    %s57 = sadd.s32 %s56, 1
    %s58 = scalar_select %p55, %s56, %s57
    %p61 = pneg %p55
    %p62 = scmp.eq.s32.totalorder %s20, 1
    %p63 = por %p61, %p62
    %p64 = scmp.ne.s32.totalorder %s56, %s59
    %p65 = scmp.eq.s32.totalorder %s20, 0
    %p66 = por %p64, %p65
    %p67 = scmp.ne.s32.totalorder %s56, %s59
    %p68 = scmp.eq.s32.totalorder %s25, 1
    %p69 = por %p67, %p68
    %p70 = scmp.ne.s32.totalorder %s59, %s60
    %p71 = scmp.eq.s32.totalorder %s25, 0
    %p72 = por %p70, %p71
    %p73 = scmp.ne.s32.totalorder %s59, %s60
    %p74 = scmp.eq.s32.totalorder %s26, 1
    %p75 = por %p73, %p74
    %p77 = scmp.ne.s32.totalorder %s60, %s76
    %p78 = scmp.eq.s32.totalorder %s26, 0
    %p79 = por %p77, %p78
    %s80 = ssub.s32 %s20, %s27
    %p81 = scmp.eq.s32.totalorder %s80, 0
    %s83 = sadd.s32 %s82, 1
    %s84 = scalar_select %p81, %s82, %s83
    %p87 = pneg %p81
    %p88 = scmp.eq.s32.totalorder %s20, 1
    %p89 = por %p87, %p88
    %p90 = scmp.ne.s32.totalorder %s82, %s85
    %p91 = scmp.eq.s32.totalorder %s20, 0
    %p92 = por %p90, %p91
    %p93 = scmp.ne.s32.totalorder %s82, %s85
    %p94 = scmp.eq.s32.totalorder %s25, 1
    %p95 = por %p93, %p94
    %p96 = scmp.ne.s32.totalorder %s85, %s86
    %p97 = scmp.eq.s32.totalorder %s25, 0
    %p98 = por %p96, %p97
    %p99 = scmp.ne.s32.totalorder %s85, %s86
    %p100 = scmp.eq.s32.totalorder %s26, 1
    %p101 = por %p99, %p100
    %p103 = scmp.ne.s32.totalorder %s86, %s102
    %p104 = scmp.eq.s32.totalorder %s26, 0
    %p105 = por %p103, %p104
    %s106 = ssub.s32 %s20, %s27
    %p107 = scmp.eq.s32.totalorder %s106, 0
    %s109 = sadd.s32 %s108, 1
    %s110 = scalar_select %p107, %s108, %s109
    %p113 = pneg %p107
    %p114 = scmp.eq.s32.totalorder %s20, 1
    %p115 = por %p113, %p114
    %p116 = scmp.ne.s32.totalorder %s108, %s111
    %p117 = scmp.eq.s32.totalorder %s20, 0
    %p118 = por %p116, %p117
    %p119 = scmp.ne.s32.totalorder %s108, %s111
    %p120 = scmp.eq.s32.totalorder %s25, 1
    %p121 = por %p119, %p120
    %p122 = scmp.ne.s32.totalorder %s111, %s112
    %p123 = scmp.eq.s32.totalorder %s25, 0
    %p124 = por %p122, %p123
    %p125 = scmp.ne.s32.totalorder %s111, %s112
    %p126 = scmp.eq.s32.totalorder %s26, 1
    %p127 = por %p125, %p126
    %p129 = scmp.ne.s32.totalorder %s112, %s128
    %p130 = scmp.eq.s32.totalorder %s26, 0
    %p131 = por %p129, %p130
    %s133 = sadd.s32 %s132, 1
    %p136 = scmp.eq.s32.totalorder %s20, 1
    %p137 = scmp.ne.s32.totalorder %s132, %s134
    %p138 = scmp.eq.s32.totalorder %s20, 0
    %p139 = por %p137, %p138
    %p140 = scmp.ne.s32.totalorder %s132, %s134
    %p141 = scmp.eq.s32.totalorder %s25, 1
    %p142 = por %p140, %p141
    %p143 = scmp.ne.s32.totalorder %s134, %s135
    %p144 = scmp.eq.s32.totalorder %s25, 0
    %p145 = por %p143, %p144
    %p146 = scmp.ne.s32.totalorder %s134, %s135
    %p147 = scmp.eq.s32.totalorder %s26, 1
    %p148 = por %p146, %p147
    %p150 = scmp.ne.s32.totalorder %s135, %s149
    %p151 = scmp.eq.s32.totalorder %s26, 0
    %p152 = por %p150, %p151
    %s154 = sadd.s32 %s153, 1
    %p157 = scmp.eq.s32.totalorder %s20, 1
    %p158 = scmp.ne.s32.totalorder %s153, %s155
    %p159 = scmp.eq.s32.totalorder %s20, 0
    %p160 = por %p158, %p159
    %p161 = scmp.ne.s32.totalorder %s153, %s155
    %p162 = scmp.eq.s32.totalorder %s25, 1
    %p163 = por %p161, %p162
    %p164 = scmp.ne.s32.totalorder %s155, %s156
    %p165 = scmp.eq.s32.totalorder %s25, 0
    %p166 = por %p164, %p165
    %p167 = scmp.ne.s32.totalorder %s155, %s156
    %p168 = scmp.eq.s32.totalorder %s26, 1
    %p169 = por %p167, %p168
    %p171 = scmp.ne.s32.totalorder %s156, %s170
    %p172 = scmp.eq.s32.totalorder %s26, 0
    %p173 = por %p171, %p172
    %s175 = sadd.s32 %s174, 1
    %p178 = scmp.eq.s32.totalorder %s20, 1
    %p179 = scmp.ne.s32.totalorder %s174, %s176
    %p180 = scmp.eq.s32.totalorder %s20, 0
    %p181 = por %p179, %p180
    %p182 = scmp.ne.s32.totalorder %s174, %s176
    %p183 = scmp.eq.s32.totalorder %s25, 1
    %p184 = por %p182, %p183
    %p185 = scmp.ne.s32.totalorder %s176, %s177
    %p186 = scmp.eq.s32.totalorder %s25, 0
    %p187 = por %p185, %p186
    %p188 = scmp.ne.s32.totalorder %s176, %s177
    %p189 = scmp.eq.s32.totalorder %s26, 1
    %p190 = por %p188, %p189
    %p192 = scmp.ne.s32.totalorder %s177, %s191
    %p193 = scmp.eq.s32.totalorder %s26, 0
    %p194 = por %p192, %p193
    %s196 = sadd.s32 %s195, 1
    %p199 = scmp.eq.s32.totalorder %s20, 1
    %p200 = scmp.ne.s32.totalorder %s195, %s197
    %p201 = scmp.eq.s32.totalorder %s20, 0
    %p202 = por %p200, %p201
    %p203 = scmp.ne.s32.totalorder %s195, %s197
    %p204 = scmp.eq.s32.totalorder %s25, 1
    %p205 = por %p203, %p204
    %p206 = scmp.ne.s32.totalorder %s197, %s198
    %p207 = scmp.eq.s32.totalorder %s25, 0
    %p208 = por %p206, %p207
    %p209 = scmp.ne.s32.totalorder %s197, %s198
    %p210 = scmp.eq.s32.totalorder %s26, 1
    %p211 = por %p209, %p210
    %p213 = scmp.ne.s32.totalorder %s198, %s212
    %p214 = scmp.eq.s32.totalorder %s26, 0
    %p215 = por %p213, %p214
    %s217 = sadd.s32 %s216, 1
    %p220 = scmp.eq.s32.totalorder %s20, 1
    %p221 = scmp.ne.s32.totalorder %s216, %s218
    %p222 = scmp.eq.s32.totalorder %s20, 0
    %p223 = por %p221, %p222
    %p224 = scmp.ne.s32.totalorder %s216, %s218
    %p225 = scmp.eq.s32.totalorder %s25, 1
    %p226 = por %p224, %p225
    %p227 = scmp.ne.s32.totalorder %s218, %s219
    %p228 = scmp.eq.s32.totalorder %s25, 0
    %p229 = por %p227, %p228
    %p230 = scmp.ne.s32.totalorder %s218, %s219
    %p231 = scmp.eq.s32.totalorder %s26, 1
    %p232 = por %p230, %p231
    %p234 = scmp.ne.s32.totalorder %s219, %s233
    %p235 = scmp.eq.s32.totalorder %s26, 0
    %p236 = por %p234, %p235
    %s238 = sadd.s32 %s237, 1
    %p241 = scmp.eq.s32.totalorder %s20, 1
    %p242 = scmp.ne.s32.totalorder %s237, %s239
    %p243 = scmp.eq.s32.totalorder %s20, 0
    %p244 = por %p242, %p243
    %p245 = scmp.ne.s32.totalorder %s237, %s239
    %p246 = scmp.eq.s32.totalorder %s25, 1
    %p247 = por %p245, %p246
    %p248 = scmp.ne.s32.totalorder %s239, %s240
    %p249 = scmp.eq.s32.totalorder %s25, 0
    %p250 = por %p248, %p249
    %p251 = scmp.ne.s32.totalorder %s239, %s240
    %p252 = scmp.eq.s32.totalorder %s26, 1
    %p253 = por %p251, %p252
    %p255 = scmp.ne.s32.totalorder %s240, %s254
    %p256 = scmp.eq.s32.totalorder %s26, 0
    %p257 = por %p255, %p256
    %s259 = sadd.s32 %s258, 1
    %p262 = scmp.eq.s32.totalorder %s20, 1
    %p263 = scmp.ne.s32.totalorder %s258, %s260
    %p264 = scmp.eq.s32.totalorder %s20, 0
    %p265 = por %p263, %p264
    %p266 = scmp.ne.s32.totalorder %s258, %s260
    %p267 = scmp.eq.s32.totalorder %s25, 1
    %p268 = por %p266, %p267
    %p269 = scmp.ne.s32.totalorder %s260, %s261
    %p270 = scmp.eq.s32.totalorder %s25, 0
    %p271 = por %p269, %p270
    %p272 = scmp.ne.s32.totalorder %s260, %s261
    %p273 = scmp.eq.s32.totalorder %s26, 1
    %p274 = por %p272, %p273
    %p276 = scmp.ne.s32.totalorder %s261, %s275
    %p277 = scmp.eq.s32.totalorder %s26, 0
    %p278 = por %p276, %p277
    %s280 = sadd.s32 %s279, 1
    %p283 = scmp.eq.s32.totalorder %s20, 1
    %p284 = scmp.ne.s32.totalorder %s279, %s281
    %p285 = scmp.eq.s32.totalorder %s20, 0
    %p286 = por %p284, %p285
    %p287 = scmp.ne.s32.totalorder %s279, %s281
    %p288 = scmp.eq.s32.totalorder %s25, 1
    %p289 = por %p287, %p288
    %p290 = scmp.ne.s32.totalorder %s281, %s282
    %p291 = scmp.eq.s32.totalorder %s25, 0
    %p292 = por %p290, %p291
    %p293 = scmp.ne.s32.totalorder %s281, %s282
    %p294 = scmp.eq.s32.totalorder %s26, 1
    %p295 = por %p293, %p294
    %p297 = scmp.ne.s32.totalorder %s282, %s296
    %p298 = scmp.eq.s32.totalorder %s26, 0
    %p299 = por %p297, %p298
    %s301 = sadd.s32 %s300, 1
    %p304 = scmp.eq.s32.totalorder %s20, 1
    %p305 = scmp.ne.s32.totalorder %s300, %s302
    %p306 = scmp.eq.s32.totalorder %s20, 0
    %p307 = por %p305, %p306
    %p308 = scmp.ne.s32.totalorder %s300, %s302
    %p309 = scmp.eq.s32.totalorder %s25, 1
    %p310 = por %p308, %p309
    %p311 = scmp.ne.s32.totalorder %s302, %s303
    %p312 = scmp.eq.s32.totalorder %s25, 0
    %p313 = por %p311, %p312
    %p314 = scmp.ne.s32.totalorder %s302, %s303
    %p315 = scmp.eq.s32.totalorder %s26, 1
    %p316 = por %p314, %p315
    %p318 = scmp.ne.s32.totalorder %s303, %s317
    %p319 = scmp.eq.s32.totalorder %s26, 0
    %p320 = por %p318, %p319
    %s322 = sadd.s32 %s321, 1
    %p325 = scmp.eq.s32.totalorder %s20, 1
    %p326 = scmp.ne.s32.totalorder %s321, %s323
    %p327 = scmp.eq.s32.totalorder %s20, 0
    %p328 = por %p326, %p327
    %p329 = scmp.ne.s32.totalorder %s321, %s323
    %p330 = scmp.eq.s32.totalorder %s25, 1
    %p331 = por %p329, %p330
    %p332 = scmp.ne.s32.totalorder %s323, %s324
    %p333 = scmp.eq.s32.totalorder %s25, 0
    %p334 = por %p332, %p333
    %p335 = scmp.ne.s32.totalorder %s323, %s324
    %p336 = scmp.eq.s32.totalorder %s26, 1
    %p337 = por %p335, %p336
    %p339 = scmp.ne.s32.totalorder %s324, %s338
    %p340 = scmp.eq.s32.totalorder %s26, 0
    %p341 = por %p339, %p340
    %s342 = ssub.s32 %s20, %s27
    %p343 = scmp.eq.s32.totalorder %s342, 0
    %s345 = sadd.s32 %s344, 1
    %s346 = scalar_select %p343, %s344, %s345
    %p349 = pneg %p343
    %p350 = scmp.eq.s32.totalorder %s20, 1
    %p351 = por %p349, %p350
    %p352 = scmp.ne.s32.totalorder %s344, %s347
    %p353 = scmp.eq.s32.totalorder %s20, 0
    %p354 = por %p352, %p353
    %p355 = scmp.ne.s32.totalorder %s344, %s347
    %p356 = scmp.eq.s32.totalorder %s25, 1
    %p357 = por %p355, %p356
    %p358 = scmp.ne.s32.totalorder %s347, %s348
    %p359 = scmp.eq.s32.totalorder %s25, 0
    %p360 = por %p358, %p359
    %p361 = scmp.ne.s32.totalorder %s347, %s348
    %p362 = scmp.eq.s32.totalorder %s26, 1
    %p363 = por %p361, %p362
    %p365 = scmp.ne.s32.totalorder %s348, %s364
    %p366 = scmp.eq.s32.totalorder %s26, 0
    %p367 = por %p365, %p366
    %p368 = scmp.le.s32.totalorder 1, %s20
    %p369 = scmp.lt.s32.totalorder %s20, 3
    %p370 = pnand %p368, %p369
    %p371 = pneg %p370
    // Predicated region
    $region9: #{decoder_forward.7} parent=5 // pred_check
      _
    $region10: #{decoder_forward.7} parent=5 // pred_check_branch
      %373 = sbr.rel (%p370) target = $region12
    $region11: #{decoder_forward.7} parent=5 // pred_region
      %s374 = ssub.s32 %s20, 1
      // Predicated region
      $region13: #{decoder_forward.7} parent=11 // pred_check
        %p375 = pneg %p145
      $region14: #{decoder_forward.7} parent=11 // pred_check_branch
        %377 = sbr.rel (%p375) target = $region16
      $region15: #{decoder_forward.7} parent=11 // pred_region
        _
      $region16: #{decoder_forward.7} parent=11 // pred_fallthru
        _
      // Predicated region
      $region17: #{decoder_forward.7} parent=11 // pred_check
        %p378 = pneg %p166
      $region18: #{decoder_forward.7} parent=11 // pred_check_branch
        %380 = sbr.rel (%p378) target = $region20
      $region19: #{decoder_forward.7} parent=11 // pred_region
        _
      $region20: #{decoder_forward.7} parent=11 // pred_fallthru
        _
      // Predicated region
      $region21: #{decoder_forward.7} parent=11 // pred_check
        %p381 = pneg %p187
      $region22: #{decoder_forward.7} parent=11 // pred_check_branch
        %383 = sbr.rel (%p381) target = $region24
      $region23: #{decoder_forward.7} parent=11 // pred_region
        _
      $region24: #{decoder_forward.7} parent=11 // pred_fallthru
        _
      // Predicated region
      $region25: #{decoder_forward.7} parent=11 // pred_check
        %p384 = pneg %p208
      $region26: #{decoder_forward.7} parent=11 // pred_check_branch
        %386 = sbr.rel (%p384) target = $region28
      $region27: #{decoder_forward.7} parent=11 // pred_region
        _
      $region28: #{decoder_forward.7} parent=11 // pred_fallthru
        _
      // Predicated region
      $region29: #{decoder_forward.7} parent=11 // pred_check
        %p387 = pneg %p229
      $region30: #{decoder_forward.7} parent=11 // pred_check_branch
        %389 = sbr.rel (%p387) target = $region32
      $region31: #{decoder_forward.7} parent=11 // pred_region
        _
      $region32: #{decoder_forward.7} parent=11 // pred_fallthru
        _
      // Predicated region
      $region33: #{decoder_forward.7} parent=11 // pred_check
        %p390 = pneg %p250
      $region34: #{decoder_forward.7} parent=11 // pred_check_branch
        %392 = sbr.rel (%p390) target = $region36
      $region35: #{decoder_forward.7} parent=11 // pred_region
        _
      $region36: #{decoder_forward.7} parent=11 // pred_fallthru
        _
      // Predicated region
      $region37: #{decoder_forward.7} parent=11 // pred_check
        %p393 = pneg %p271
      $region38: #{decoder_forward.7} parent=11 // pred_check_branch
        %395 = sbr.rel (%p393) target = $region40
      $region39: #{decoder_forward.7} parent=11 // pred_region
        _
      $region40: #{decoder_forward.7} parent=11 // pred_fallthru
        _
      // Predicated region
      $region41: #{decoder_forward.7} parent=11 // pred_check
        %p396 = pneg %p292
      $region42: #{decoder_forward.7} parent=11 // pred_check_branch
        %398 = sbr.rel (%p396) target = $region44
      $region43: #{decoder_forward.7} parent=11 // pred_region
        _
      $region44: #{decoder_forward.7} parent=11 // pred_fallthru
        _
      // Predicated region
      $region45: #{decoder_forward.7} parent=11 // pred_check
        %p399 = pneg %p313
      $region46: #{decoder_forward.7} parent=11 // pred_check_branch
        %401 = sbr.rel (%p399) target = $region48
      $region47: #{decoder_forward.7} parent=11 // pred_region
        _
      $region48: #{decoder_forward.7} parent=11 // pred_fallthru
        _
      // Predicated region
      $region49: #{decoder_forward.7} parent=11 // pred_check
        %p402 = pneg %p334
      $region50: #{decoder_forward.7} parent=11 // pred_check_branch
        %404 = sbr.rel (%p402) target = $region52
      $region51: #{decoder_forward.7} parent=11 // pred_region
        _
      $region52: #{decoder_forward.7} parent=11 // pred_fallthru
        _
    $region12: #{decoder_forward.7} parent=5 // pred_fallthru
      _
    %p405 = scmp.lt.s32.totalorder %s20, 2
    // Predicated region
    $region53: #{decoder_forward.7} parent=5 // pred_check
      %p406 = pneg %p405
    $region54: #{decoder_forward.7} parent=5 // pred_check_branch
      %408 = sbr.rel (%p406) target = $region56
    $region55: #{decoder_forward.7} parent=5 // pred_region
      // Predicated region
      $region57: #{decoder_forward.7} parent=55 // pred_check
        %p409 = pneg %p40
      $region58: #{decoder_forward.7} parent=55 // pred_check_branch
        %411 = sbr.rel (%p409) target = $region60
      $region59: #{decoder_forward.7} parent=55 // pred_region
        %p412 = scmp.lt.s32.totalorder %s20, 1
        %s413 = scalar_select %p412, %s20, 1
        %s414 = smul.addr %s413, 8
        %s415 = scalar_lea.vmem %s0, %s414
      $region60: #{decoder_forward.7} parent=55 // pred_fallthru
        _
      // Predicated region
      $region61: #{decoder_forward.7} parent=55 // pred_check
        %p416 = pneg %p66
      $region62: #{decoder_forward.7} parent=55 // pred_check_branch
        %418 = sbr.rel (%p416) target = $region64
      $region63: #{decoder_forward.7} parent=55 // pred_region
        %p419 = scmp.lt.s32.totalorder %s20, 1
        %s420 = scalar_select %p419, %s20, 1
        %s421 = smul.addr %s420, 8
        %s422 = scalar_lea.vmem %s1, %s421
      $region64: #{decoder_forward.7} parent=55 // pred_fallthru
        _
      // Predicated region
      $region65: #{decoder_forward.7} parent=55 // pred_check
        %p423 = pneg %p92
      $region66: #{decoder_forward.7} parent=55 // pred_check_branch
        %425 = sbr.rel (%p423) target = $region68
      $region67: #{decoder_forward.7} parent=55 // pred_region
        %p426 = scmp.lt.s32.totalorder %s20, 1
        %s427 = scalar_select %p426, %s20, 1
        %s428 = smul.addr %s427, 8
        %s429 = scalar_lea.vmem %s2, %s428
      $region68: #{decoder_forward.7} parent=55 // pred_fallthru
        _
      // Predicated region
      $region69: #{decoder_forward.7} parent=55 // pred_check
        %p430 = pneg %p118
      $region70: #{decoder_forward.7} parent=55 // pred_check_branch
        %432 = sbr.rel (%p430) target = $region72
      $region71: #{decoder_forward.7} parent=55 // pred_region
        %p433 = scmp.lt.s32.totalorder %s20, 1
        %s434 = scalar_select %p433, %s20, 1
        %s435 = smul.addr %s434, 8
        %s436 = scalar_lea.vmem %s3, %s435
      $region72: #{decoder_forward.7} parent=55 // pred_fallthru
        _
    $region56: #{decoder_forward.7} parent=5 // pred_fallthru
      _
    %p437 = scmp.le.s32.totalorder 1, %s20
    %p438 = scmp.lt.s32.totalorder %s20, 3
    %p439 = pnand %p437, %p438
    %p440 = pneg %p439
    // Predicated region
    $region73: #{decoder_forward.7} parent=5 // pred_check
      _
    $region74: #{decoder_forward.7} parent=5 // pred_check_branch
      %442 = sbr.rel (%p439) target = $region76
    $region75: #{decoder_forward.7} parent=5 // pred_region
      %s443 = ssub.s32 %s20, 1
      %p444 = scmp.lt.s32.totalorder %s25, 1
      %s445 = scalar_select %p444, %s25, 1
      %s446 = smul.addr %s445, 8
      %s447 = scalar_lea.vmem %s0, %s446
      %p448 = pneg %p46
      %p449 = pneg %p43
      %p450 = scmp.lt.s32.totalorder %s25, 1
      %s451 = scalar_select %p450, %s25, 1
      %s452 = smul.addr %s451, 8
      %s453 = scalar_lea.vmem %s1, %s452
      %p454 = pneg %p72
      %p455 = pneg %p69
      %p456 = scmp.lt.s32.totalorder %s25, 1
      %s457 = scalar_select %p456, %s25, 1
      %s458 = smul.addr %s457, 8
      %s459 = scalar_lea.vmem %s2, %s458
      %p460 = pneg %p98
      %p461 = pneg %p95
      %p462 = scmp.lt.s32.totalorder %s25, 1
      %s463 = scalar_select %p462, %s25, 1
      %s464 = smul.addr %s463, 8
      %s465 = scalar_lea.vmem %s3, %s464
      %p466 = pneg %p124
      %p467 = pneg %p121
      %p468 = pneg %p145
      %p469 = pneg %p142
      %p470 = pneg %p166
      %p471 = pneg %p163
      %p472 = pneg %p187
      %p473 = pneg %p184
      %p474 = pneg %p208
      %p475 = pneg %p205
      %p476 = pneg %p229
      %p477 = pneg %p226
      %p478 = pneg %p250
      %p479 = pneg %p247
      %p480 = pneg %p271
      %p481 = pneg %p268
      %p482 = pneg %p292
      %p483 = pneg %p289
      %p484 = pneg %p313
      %p485 = pneg %p310
      %p486 = pneg %p334
      %p487 = pneg %p331
      %p488 = pneg %p360
      %p489 = pneg %p357
      %p490 = scmp.lt.s32.totalorder %s25, 1
      %s491 = scalar_select %p490, %s25, 1
      %s492 = smul.addr %s491, 8
      %s493 = scalar_lea.vmem %s14, %s492
      %p494 = scmp.lt.s32.totalorder %s25, 1
      %s495 = scalar_select %p494, %s25, 1
      %s496 = smul.addr %s495, 8
      %s497 = scalar_lea.vmem %s0, %s496
      %p498 = scmp.lt.s32.totalorder %s25, 1
      %s499 = scalar_select %p498, %s25, 1
      %s500 = smul.addr %s499, 8
      %s501 = scalar_lea.vmem %s1, %s500
      %p502 = scmp.lt.s32.totalorder %s25, 1
      %s503 = scalar_select %p502, %s25, 1
      %s504 = smul.addr %s503, 8
      %s505 = scalar_lea.vmem %s2, %s504
      %p506 = scmp.lt.s32.totalorder %s25, 1
      %s507 = scalar_select %p506, %s25, 1
      %s508 = smul.addr %s507, 8
      %s509 = scalar_lea.vmem %s3, %s508
      %p510 = scmp.lt.s32.totalorder %s25, 1
      %s511 = scalar_select %p510, %s25, 1
      %s512 = smul.addr %s511, 8
      %s513 = scalar_lea.vmem %s14, %s512
      %v515 = vld [vmem:[%s497] sm:$0xff]
      %v516 = vpack.c.bf16 %v515, %v515
      %v517 = vld [vmem:[%s501] sm:$0xff]
      %v518 = vpack.c.bf16 %v517, %v517
      %v519 = vld [vmem:[%s505] sm:$0xff]
      %v520 = vpack.c.bf16 %v519, %v519
      %v521 = vld [vmem:[%s4] sm:$0xf]
      %v522 = vld [vmem:[%s4 + $0x4] sm:$0xf]
      %v523 = vld [vmem:[%s4 + $0x8] sm:$0xf]
      %v524 = vld [vmem:[%s4 + $0xc] sm:$0xf]
      %v525 = vld [vmem:[%s4 + $0x10] sm:$0xf]
      %v526 = vld [vmem:[%s4 + $0x14] sm:$0xf]
      %v527 = vld [vmem:[%s4 + $0x18] sm:$0xf]
      %v528 = vld [vmem:[%s4 + $0x1c] sm:$0xf]
      %v529 = vld [vmem:[%s5] sm:$0x1]
      %v531 = vlaneseq
      %v532 = vshrl.u32 %v531, 7
      %v533 = vsub.s32 0, %v532
      %v534 = vrot.slane %v529, %v533
      %v544 = vunpack.c.l.b16 %v521
      %v545 = vunpack.c.l.b16 %v522
      %v546 = vunpack.c.l.b16 %v523
      %v547 = vunpack.c.l.b16 %v524
      %v548 = vunpack.c.l.b16 %v525
      %v549 = vunpack.c.l.b16 %v526
      %v550 = vunpack.c.l.b16 %v527
      %v551 = vunpack.c.l.b16 %v528
      %v552 = vpack.c.b16 %v545, %v544
      %v553 = vpack.c.b16 %v547, %v546
      %v554 = vpack.c.b16 %v549, %v548
      %v555 = vpack.c.b16 %v551, %v550
      %vm560 = vcmask 523264
      %v562 = vsel %vm560, %v516, 0
      %564 = vmatprep.subr.bf16.mxu0 0
      %565 = vmatpush1.bf16.msra.mxu0 %v552
      %566 = vmatprep.subr.bf16.mxu0 0
      %567 = vmatpush1.bf16.msra.mxu0 %v553
      %568 = vmatprep.subr.bf16.mxu0 0
      %569 = vmatpush1.bf16.msra.mxu0 %v554
      %570 = vmatprep.subr.bf16.mxu0 0
      %571 = vmatpush1.bf16.msra.mxu0 %v555
      %572 = vmatprep.subr.bf16.mxu0 0
      %573 = vmatpush1.bf16.msra.mxu0 0
      %574 = vmatprep.subr.bf16.mxu0 0
      %575 = vmatpush1.bf16.msra.mxu0 0
      %576 = vmatprep.subr.bf16.mxu0 0
      %577 = vmatpush1.bf16.msra.mxu0 0
      %578 = vmatprep.subr.bf16.mxu0 0
      %579 = vmatpush1.bf16.msra.mxu0 0
      %580 = vmatprep.subr.bf16.mxu0 0
      %581 = vmatpush1.bf16.msra.mxu0 0
      %582 = vmatprep.subr.bf16.mxu0 0
      %583 = vmatpush1.bf16.msra.mxu0 0
      %584 = vmatprep.subr.bf16.mxu0 0
      %585 = vmatpush1.bf16.msra.mxu0 0
      %586 = vmatprep.subr.bf16.mxu0 0
      %587 = vmatpush1.bf16.msra.mxu0 0
      %588 = vmatprep.subr.bf16.mxu0 0
      %589 = vmatpush1.bf16.msra.mxu0 0
      %590 = vmatprep.subr.bf16.mxu0 0
      %591 = vmatpush1.bf16.msra.mxu0 0
      %592 = vmatprep.subr.bf16.mxu0 0
      %593 = vmatpush1.bf16.msra.mxu0 0
      %594 = vmatprep.subr.bf16.mxu0 0
      %595 = vmatpush1.bf16.msra.mxu0 0
      %596 = vmatprep.mubr.bf16.mxu0 0
      %597 = vmatmul.mubr.bf16.gmra.mrb[0].mxu0 %v562
      %v598 = vpop.f32.mrb[0].mxu0
      %v599 = vadd.f32 %v534, %v598
      %v600 = vpop.f32.mrb[0].mxu0
      %v601 = vpop.f32.mrb[0].mxu0
      %v602 = vpop.f32.mrb[0].mxu0
      %603 = vdwg.mxu0
      %v604 = vld [vmem:[%s6] sm:$0xf]
      %v605 = vld [vmem:[%s6 + $0x4] sm:$0xf]
      %v606 = vld [vmem:[%s6 + $0x8] sm:$0xf]
      %v607 = vld [vmem:[%s6 + $0xc] sm:$0xf]
      %v608 = vld [vmem:[%s6 + $0x10] sm:$0xf]
      %v609 = vld [vmem:[%s6 + $0x14] sm:$0xf]
      %v610 = vld [vmem:[%s6 + $0x18] sm:$0xf]
      %v611 = vld [vmem:[%s6 + $0x1c] sm:$0xf]
      %v612 = vld [vmem:[%s7] sm:$0x1]
      %v614 = vlaneseq
      %v615 = vshrl.u32 %v614, 7
      %v616 = vsub.s32 0, %v615
      %v617 = vrot.slane %v612, %v616
      %v627 = vunpack.c.l.b16 %v604
      %v628 = vunpack.c.l.b16 %v605
      %v629 = vunpack.c.l.b16 %v606
      %v630 = vunpack.c.l.b16 %v607
      %v631 = vunpack.c.l.b16 %v608
      %v632 = vunpack.c.l.b16 %v609
      %v633 = vunpack.c.l.b16 %v610
      %v634 = vunpack.c.l.b16 %v611
      %v635 = vpack.c.b16 %v628, %v627
      %v636 = vpack.c.b16 %v630, %v629
      %v637 = vpack.c.b16 %v632, %v631
      %v638 = vpack.c.b16 %v634, %v633
      %v644 = vsel %vm560, %v518, 0
      %646 = vmatprep.subr.bf16.mxu0 0
      %647 = vmatpush1.bf16.msra.mxu0 %v635
      %648 = vmatprep.subr.bf16.mxu0 0
      %649 = vmatpush1.bf16.msra.mxu0 %v636
      %650 = vmatprep.subr.bf16.mxu0 0
      %651 = vmatpush1.bf16.msra.mxu0 %v637
      %652 = vmatprep.subr.bf16.mxu0 0
      %653 = vmatpush1.bf16.msra.mxu0 %v638
      %654 = vmatprep.subr.bf16.mxu0 0
      %655 = vmatpush1.bf16.msra.mxu0 0
      %656 = vmatprep.subr.bf16.mxu0 0
      %657 = vmatpush1.bf16.msra.mxu0 0
      %658 = vmatprep.subr.bf16.mxu0 0
      %659 = vmatpush1.bf16.msra.mxu0 0
      %660 = vmatprep.subr.bf16.mxu0 0
      %661 = vmatpush1.bf16.msra.mxu0 0
      %662 = vmatprep.subr.bf16.mxu0 0
      %663 = vmatpush1.bf16.msra.mxu0 0
      %664 = vmatprep.subr.bf16.mxu0 0
      %665 = vmatpush1.bf16.msra.mxu0 0
      %666 = vmatprep.subr.bf16.mxu0 0
      %667 = vmatpush1.bf16.msra.mxu0 0
      %668 = vmatprep.subr.bf16.mxu0 0
      %669 = vmatpush1.bf16.msra.mxu0 0
      %670 = vmatprep.subr.bf16.mxu0 0
      %671 = vmatpush1.bf16.msra.mxu0 0
      %672 = vmatprep.subr.bf16.mxu0 0
      %673 = vmatpush1.bf16.msra.mxu0 0
      %674 = vmatprep.subr.bf16.mxu0 0
      %675 = vmatpush1.bf16.msra.mxu0 0
      %676 = vmatprep.subr.bf16.mxu0 0
      %677 = vmatpush1.bf16.msra.mxu0 0
      %678 = vmatprep.mubr.bf16.mxu0 0
      %679 = vmatmul.mubr.bf16.gmra.mrb[0].mxu0 %v644
      %v680 = vpop.f32.mrb[0].mxu0
      %v681 = vadd.f32 %v617, %v680
      %v682 = vpop.f32.mrb[0].mxu0
      %v683 = vpop.f32.mrb[0].mxu0
      %v684 = vpop.f32.mrb[0].mxu0
      %685 = vdwg.mxu0
      %v686 = vld [vmem:[%s8] sm:$0xf]
      %v687 = vld [vmem:[%s8 + $0x4] sm:$0xf]
      %v688 = vld [vmem:[%s8 + $0x8] sm:$0xf]
      %v689 = vld [vmem:[%s8 + $0xc] sm:$0xf]
      %v690 = vld [vmem:[%s8 + $0x10] sm:$0xf]
      %v691 = vld [vmem:[%s8 + $0x14] sm:$0xf]
      %v692 = vld [vmem:[%s8 + $0x18] sm:$0xf]
      %v693 = vld [vmem:[%s8 + $0x1c] sm:$0xf]
      %v694 = vld [vmem:[%s9] sm:$0x1]
      %v696 = vlaneseq
      %v697 = vshrl.u32 %v696, 7
      %v698 = vsub.s32 0, %v697
      %v699 = vrot.slane %v694, %v698
      %v709 = vunpack.c.l.b16 %v686
      %v710 = vunpack.c.l.b16 %v687
      %v711 = vunpack.c.l.b16 %v688
      %v712 = vunpack.c.l.b16 %v689
      %v713 = vunpack.c.l.b16 %v690
      %v714 = vunpack.c.l.b16 %v691
      %v715 = vunpack.c.l.b16 %v692
      %v716 = vunpack.c.l.b16 %v693
      %v717 = vpack.c.b16 %v710, %v709
      %v718 = vpack.c.b16 %v712, %v711
      %v719 = vpack.c.b16 %v714, %v713
      %v720 = vpack.c.b16 %v716, %v715
      %v726 = vsel %vm560, %v520, 0
      %728 = vmatprep.subr.bf16.mxu0 0
      %729 = vmatpush1.bf16.msra.mxu0 %v717
      %730 = vmatprep.subr.bf16.mxu0 0
      %731 = vmatpush1.bf16.msra.mxu0 %v718
      %732 = vmatprep.subr.bf16.mxu0 0
      %733 = vmatpush1.bf16.msra.mxu0 %v719
      %734 = vmatprep.subr.bf16.mxu0 0
      %735 = vmatpush1.bf16.msra.mxu0 %v720
      %736 = vmatprep.subr.bf16.mxu0 0
      %737 = vmatpush1.bf16.msra.mxu0 0
      %738 = vmatprep.subr.bf16.mxu0 0
      %739 = vmatpush1.bf16.msra.mxu0 0
      %740 = vmatprep.subr.bf16.mxu0 0
      %741 = vmatpush1.bf16.msra.mxu0 0
      %742 = vmatprep.subr.bf16.mxu0 0
      %743 = vmatpush1.bf16.msra.mxu0 0
      %744 = vmatprep.subr.bf16.mxu0 0
      %745 = vmatpush1.bf16.msra.mxu0 0
      %746 = vmatprep.subr.bf16.mxu0 0
      %747 = vmatpush1.bf16.msra.mxu0 0
      %748 = vmatprep.subr.bf16.mxu0 0
      %749 = vmatpush1.bf16.msra.mxu0 0
      %750 = vmatprep.subr.bf16.mxu0 0
      %751 = vmatpush1.bf16.msra.mxu0 0
      %752 = vmatprep.subr.bf16.mxu0 0
      %753 = vmatpush1.bf16.msra.mxu0 0
      %754 = vmatprep.subr.bf16.mxu0 0
      %755 = vmatpush1.bf16.msra.mxu0 0
      %756 = vmatprep.subr.bf16.mxu0 0
      %757 = vmatpush1.bf16.msra.mxu0 0
      %758 = vmatprep.subr.bf16.mxu0 0
      %759 = vmatpush1.bf16.msra.mxu0 0
      %760 = vmatprep.mubr.bf16.mxu0 0
      %761 = vmatmul.mubr.bf16.gmra.mrb[0].mxu0 %v726
      %v762 = vpop.f32.mrb[0].mxu0
      %v763 = vadd.f32 %v699, %v762
      %v764 = vpop.f32.mrb[0].mxu0
      %v765 = vpop.f32.mrb[0].mxu0
      %v766 = vpop.f32.mrb[0].mxu0
      %767 = vdwg.mxu0
      %769 = vrot.lane.b32.xlu0 %v599, 120
      %v770 = vpop.permute.xlu0 %769
      %772 = vrot.lane.b32.xlu0 %v599, 112
      %v773 = vpop.permute.xlu0 %772
      %775 = vrot.lane.b32.xlu0 %v599, 104
      %v776 = vpop.permute.xlu0 %775
      %778 = vrot.lane.b32.xlu0 %v599, 96
      %v779 = vpop.permute.xlu0 %778
      %781 = vrot.lane.b32.xlu0 %v599, 88
      %v782 = vpop.permute.xlu0 %781
      %784 = vrot.lane.b32.xlu0 %v599, 80
      %v785 = vpop.permute.xlu0 %784
      %787 = vrot.lane.b32.xlu0 %v599, 72
      %v788 = vpop.permute.xlu0 %787
      %791 = vrot.lane.b32.xlu0 %v681, 120
      %v792 = vpop.permute.xlu0 %791
      %794 = vrot.lane.b32.xlu0 %v681, 112
      %v795 = vpop.permute.xlu0 %794
      %797 = vrot.lane.b32.xlu0 %v681, 104
      %v798 = vpop.permute.xlu0 %797
      %800 = vrot.lane.b32.xlu0 %v681, 96
      %v801 = vpop.permute.xlu0 %800
      %803 = vrot.lane.b32.xlu0 %v681, 88
      %v804 = vpop.permute.xlu0 %803
      %806 = vrot.lane.b32.xlu0 %v681, 80
      %v807 = vpop.permute.xlu0 %806
      %809 = vrot.lane.b32.xlu0 %v681, 72
      %v810 = vpop.permute.xlu0 %809
      %813 = vrot.lane.b32.xlu0 %v763, 120
      %v814 = vpop.permute.xlu0 %813
      %816 = vrot.lane.b32.xlu0 %v763, 112
      %v817 = vpop.permute.xlu0 %816
      %819 = vrot.lane.b32.xlu0 %v763, 104
      %v820 = vpop.permute.xlu0 %819
      %822 = vrot.lane.b32.xlu0 %v763, 96
      %v823 = vpop.permute.xlu0 %822
      %825 = vrot.lane.b32.xlu0 %v763, 88
      %v826 = vpop.permute.xlu0 %825
      %828 = vrot.lane.b32.xlu0 %v763, 80
      %v829 = vpop.permute.xlu0 %828
      %831 = vrot.lane.b32.xlu0 %v763, 72
      %v832 = vpop.permute.xlu0 %831
      %v834 = vpack.c.bf16 %v599, %v599
      %v835 = vpack.c.bf16 %v770, %v770
      %v836 = vpack.c.bf16 %v773, %v773
      %v837 = vpack.c.bf16 %v776, %v776
      %v838 = vpack.c.bf16 %v779, %v779
      %v839 = vpack.c.bf16 %v782, %v782
      %v840 = vpack.c.bf16 %v785, %v785
      %v841 = vpack.c.bf16 %v788, %v788
      %v842 = vpack.c.bf16 %v681, %v681
      %v843 = vpack.c.bf16 %v792, %v792
      %v844 = vpack.c.bf16 %v795, %v795
      %v845 = vpack.c.bf16 %v798, %v798
      %v846 = vpack.c.bf16 %v801, %v801
      %v847 = vpack.c.bf16 %v804, %v804
      %v848 = vpack.c.bf16 %v807, %v807
      %v849 = vpack.c.bf16 %v810, %v810
      %v850 = vld [vmem:[%s509] sm:$0xff]
      %vm851 = vcmask 64512
      %v853 = vsel %vm851, %v834, 0
      %v856 = vsel %vm851, %v842, 0
      %858 = vmatprep.subr.bf16.mxu0 0
      %859 = vmatpush1.bf16.xpose.msra.mxu0 %v856
      %860 = vmatprep.subr.bf16.mxu0 0
      %861 = vmatpush1.bf16.xpose.msra.mxu0 0
      %862 = vmatprep.subr.bf16.mxu0 0
      %863 = vmatpush1.bf16.xpose.msra.mxu0 0
      %864 = vmatprep.subr.bf16.mxu0 0
      %865 = vmatpush1.bf16.xpose.msra.mxu0 0
      %866 = vmatprep.subr.bf16.mxu0 0
      %867 = vmatpush1.bf16.xpose.msra.mxu0 0
      %868 = vmatprep.subr.bf16.mxu0 0
      %869 = vmatpush1.bf16.xpose.msra.mxu0 0
      %870 = vmatprep.subr.bf16.mxu0 0
      %871 = vmatpush1.bf16.xpose.msra.mxu0 0
      %872 = vmatprep.subr.bf16.mxu0 0
      %873 = vmatpush1.bf16.xpose.msra.mxu0 0
      %874 = vmatprep.subr.bf16.mxu0 0
      %875 = vmatpush1.bf16.xpose.msra.mxu0 0
      %876 = vmatprep.subr.bf16.mxu0 0
      %877 = vmatpush1.bf16.xpose.msra.mxu0 0
      %878 = vmatprep.subr.bf16.mxu0 0
      %879 = vmatpush1.bf16.xpose.msra.mxu0 0
      %880 = vmatprep.subr.bf16.mxu0 0
      %881 = vmatpush1.bf16.xpose.msra.mxu0 0
      %882 = vmatprep.subr.bf16.mxu0 0
      %883 = vmatpush1.bf16.xpose.msra.mxu0 0
      %884 = vmatprep.subr.bf16.mxu0 0
      %885 = vmatpush1.bf16.xpose.msra.mxu0 0
      %886 = vmatprep.subr.bf16.mxu0 0
      %887 = vmatpush1.bf16.xpose.msra.mxu0 0
      %888 = vmatprep.subr.bf16.mxu0 0
      %889 = vmatpush1.bf16.xpose.msra.mxu0 0
      %890 = vmatprep.mubr.bf16.mxu0 0
      %891 = vmatmul.mubr.bf16.gmra.mrb[0].mxu0 %v853
      %v892 = vpop.f32.mrb[0].mxu0
      %v893 = vadd.f32 %v850, %v892
      %v894 = vpop.f32.mrb[0].mxu0
      %v895 = vpop.f32.mrb[0].mxu0
      %v896 = vpop.f32.mrb[0].mxu0
      %897 = vdwg.mxu0
      %v899 = vsel %vm851, %v835, 0
      %v902 = vsel %vm851, %v843, 0
      %904 = vmatprep.subr.bf16.mxu0 0
      %905 = vmatpush1.bf16.xpose.msra.mxu0 %v902
      %906 = vmatprep.subr.bf16.mxu0 0
      %907 = vmatpush1.bf16.xpose.msra.mxu0 0
      %908 = vmatprep.subr.bf16.mxu0 0
      %909 = vmatpush1.bf16.xpose.msra.mxu0 0
      %910 = vmatprep.subr.bf16.mxu0 0
      %911 = vmatpush1.bf16.xpose.msra.mxu0 0
      %912 = vmatprep.subr.bf16.mxu0 0
      %913 = vmatpush1.bf16.xpose.msra.mxu0 0
      %914 = vmatprep.subr.bf16.mxu0 0
      %915 = vmatpush1.bf16.xpose.msra.mxu0 0
      %916 = vmatprep.subr.bf16.mxu0 0
      %917 = vmatpush1.bf16.xpose.msra.mxu0 0
      %918 = vmatprep.subr.bf16.mxu0 0
      %919 = vmatpush1.bf16.xpose.msra.mxu0 0
      %920 = vmatprep.subr.bf16.mxu0 0
      %921 = vmatpush1.bf16.xpose.msra.mxu0 0
      %922 = vmatprep.subr.bf16.mxu0 0
      %923 = vmatpush1.bf16.xpose.msra.mxu0 0
      %924 = vmatprep.subr.bf16.mxu0 0
      %925 = vmatpush1.bf16.xpose.msra.mxu0 0
      %926 = vmatprep.subr.bf16.mxu0 0
      %927 = vmatpush1.bf16.xpose.msra.mxu0 0
      %928 = vmatprep.subr.bf16.mxu0 0
      %929 = vmatpush1.bf16.xpose.msra.mxu0 0
      %930 = vmatprep.subr.bf16.mxu0 0
      %931 = vmatpush1.bf16.xpose.msra.mxu0 0
      %932 = vmatprep.subr.bf16.mxu0 0
      %933 = vmatpush1.bf16.xpose.msra.mxu0 0
      %934 = vmatprep.subr.bf16.mxu0 0
      %935 = vmatpush1.bf16.xpose.msra.mxu0 0
      %936 = vmatprep.mubr.bf16.mxu0 0
      %937 = vmatmul.mubr.bf16.gmra.mrb[0].mxu0 %v899
      %v938 = vpop.f32.mrb[0].mxu0
      %v939 = vadd.f32 %v850, %v938
      %v940 = vpop.f32.mrb[0].mxu0
      %v941 = vpop.f32.mrb[0].mxu0
      %v942 = vpop.f32.mrb[0].mxu0
      %943 = vdwg.mxu0
      %v945 = vsel %vm851, %v836, 0
      %v948 = vsel %vm851, %v844, 0
      %950 = vmatprep.subr.bf16.mxu0 0
      %951 = vmatpush1.bf16.xpose.msra.mxu0 %v948
      %952 = vmatprep.subr.bf16.mxu0 0
      %953 = vmatpush1.bf16.xpose.msra.mxu0 0
      %954 = vmatprep.subr.bf16.mxu0 0
      %955 = vmatpush1.bf16.xpose.msra.mxu0 0
      %956 = vmatprep.subr.bf16.mxu0 0
      %957 = vmatpush1.bf16.xpose.msra.mxu0 0
      %958 = vmatprep.subr.bf16.mxu0 0
      %959 = vmatpush1.bf16.xpose.msra.mxu0 0
      %960 = vmatprep.subr.bf16.mxu0 0
      %961 = vmatpush1.bf16.xpose.msra.mxu0 0
      %962 = vmatprep.subr.bf16.mxu0 0
      %963 = vmatpush1.bf16.xpose.msra.mxu0 0
      %964 = vmatprep.subr.bf16.mxu0 0
      %965 = vmatpush1.bf16.xpose.msra.mxu0 0
      %966 = vmatprep.subr.bf16.mxu0 0
      %967 = vmatpush1.bf16.xpose.msra.mxu0 0
      %968 = vmatprep.subr.bf16.mxu0 0
      %969 = vmatpush1.bf16.xpose.msra.mxu0 0
      %970 = vmatprep.subr.bf16.mxu0 0
      %971 = vmatpush1.bf16.xpose.msra.mxu0 0
      %972 = vmatprep.subr.bf16.mxu0 0
      %973 = vmatpush1.bf16.xpose.msra.mxu0 0
      %974 = vmatprep.subr.bf16.mxu0 0
      %975 = vmatpush1.bf16.xpose.msra.mxu0 0
      %976 = vmatprep.subr.bf16.mxu0 0
      %977 = vmatpush1.bf16.xpose.msra.mxu0 0
      %978 = vmatprep.subr.bf16.mxu0 0
      %979 = vmatpush1.bf16.xpose.msra.mxu0 0
      %980 = vmatprep.subr.bf16.mxu0 0
      %981 = vmatpush1.bf16.xpose.msra.mxu0 0
      %982 = vmatprep.mubr.bf16.mxu0 0
      %983 = vmatmul.mubr.bf16.gmra.mrb[0].mxu0 %v945
      %v984 = vpop.f32.mrb[0].mxu0
      %v985 = vadd.f32 %v850, %v984
      %v986 = vpop.f32.mrb[0].mxu0
      %v987 = vpop.f32.mrb[0].mxu0
      %v988 = vpop.f32.mrb[0].mxu0
      %989 = vdwg.mxu0
      %v991 = vsel %vm851, %v837, 0
      %v994 = vsel %vm851, %v845, 0
      %996 = vmatprep.subr.bf16.mxu0 0
      %997 = vmatpush1.bf16.xpose.msra.mxu0 %v994
      %998 = vmatprep.subr.bf16.mxu0 0
      %999 = vmatpush1.bf16.xpose.msra.mxu0 0
      %1000 = vmatprep.subr.bf16.mxu0 0
      %1001 = vmatpush1.bf16.xpose.msra.mxu0 0
      %1002 = vmatprep.subr.bf16.mxu0 0
      %1003 = vmatpush1.bf16.xpose.msra.mxu0 0
      %1004 = vmatprep.subr.bf16.mxu0 0
      %1005 = vmatpush1.bf16.xpose.msra.mxu0 0
      %1006 = vmatprep.subr.bf16.mxu0 0
      %1007 = vmatpush1.bf16.xpose.msra.mxu0 0
      %1008 = vmatprep.subr.bf16.mxu0 0
      %1009 = vmatpush1.bf16.xpose.msra.mxu0 0
      %1010 = vmatprep.subr.bf16.mxu0 0
      %1011 = vmatpush1.bf16.xpose.msra.mxu0 0
      %1012 = vmatprep.subr.bf16.mxu0 0
      %1013 = vmatpush1.bf16.xpose.msra.mxu0 0
      %1014 = vmatprep.subr.bf16.mxu0 0
      %1015 = vmatpush1.bf16.xpose.msra.mxu0 0
      %1016 = vmatprep.subr.bf16.mxu0 0
      %1017 = vmatpush1.bf16.xpose.msra.mxu0 0
      %1018 = vmatprep.subr.bf16.mxu0 0
      %1019 = vmatpush1.bf16.xpose.msra.mxu0 0
      %1020 = vmatprep.subr.bf16.mxu0 0
      %1021 = vmatpush1.bf16.xpose.msra.mxu0 0
      %1022 = vmatprep.subr.bf16.mxu0 0
      %1023 = vmatpush1.bf16.xpose.msra.mxu0 0
      %1024 = vmatprep.subr.bf16.mxu0 0
      %1025 = vmatpush1.bf16.xpose.msra.mxu0 0
      %1026 = vmatprep.subr.bf16.mxu0 0
      %1027 = vmatpush1.bf16.xpose.msra.mxu0 0
      %1028 = vmatprep.mubr.bf16.mxu0 0
      %1029 = vmatmul.mubr.bf16.gmra.mrb[0].mxu0 %v991
      %v1030 = vpop.f32.mrb[0].mxu0
      %v1031 = vadd.f32 %v850, %v1030
      %v1032 = vpop.f32.mrb[0].mxu0
      %v1033 = vpop.f32.mrb[0].mxu0
      %v1034 = vpop.f32.mrb[0].mxu0
      %1035 = vdwg.mxu0
      %v1037 = vsel %vm851, %v838, 0
      %v1040 = vsel %vm851, %v846, 0
      %1042 = vmatprep.subr.bf16.mxu0 0
      %1043 = vmatpush1.bf16.xpose.msra.mxu0 %v1040
      %1044 = vmatprep.subr.bf16.mxu0 0
      %1045 = vmatpush1.bf16.xpose.msra.mxu0 0
      %1046 = vmatprep.subr.bf16.mxu0 0
      %1047 = vmatpush1.bf16.xpose.msra.mxu0 0
      %1048 = vmatprep.subr.bf16.mxu0 0
      %1049 = vmatpush1.bf16.xpose.msra.mxu0 0
      %1050 = vmatprep.subr.bf16.mxu0 0
      %1051 = vmatpush1.bf16.xpose.msra.mxu0 0
      %1052 = vmatprep.subr.bf16.mxu0 0
      %1053 = vmatpush1.bf16.xpose.msra.mxu0 0
      %1054 = vmatprep.subr.bf16.mxu0 0
      %1055 = vmatpush1.bf16.xpose.msra.mxu0 0
      %1056 = vmatprep.subr.bf16.mxu0 0
      %1057 = vmatpush1.bf16.xpose.msra.mxu0 0
      %1058 = vmatprep.subr.bf16.mxu0 0
      %1059 = vmatpush1.bf16.xpose.msra.mxu0 0
      %1060 = vmatprep.subr.bf16.mxu0 0
      %1061 = vmatpush1.bf16.xpose.msra.mxu0 0
      %1062 = vmatprep.subr.bf16.mxu0 0
      %1063 = vmatpush1.bf16.xpose.msra.mxu0 0
      %1064 = vmatprep.subr.bf16.mxu0 0
      %1065 = vmatpush1.bf16.xpose.msra.mxu0 0
      %1066 = vmatprep.subr.bf16.mxu0 0
      %1067 = vmatpush1.bf16.xpose.msra.mxu0 0
      %1068 = vmatprep.subr.bf16.mxu0 0
      %1069 = vmatpush1.bf16.xpose.msra.mxu0 0
      %1070 = vmatprep.subr.bf16.mxu0 0
      %1071 = vmatpush1.bf16.xpose.msra.mxu0 0
      %1072 = vmatprep.subr.bf16.mxu0 0
      %1073 = vmatpush1.bf16.xpose.msra.mxu0 0
      %1074 = vmatprep.mubr.bf16.mxu0 0
      %1075 = vmatmul.mubr.bf16.gmra.mrb[0].mxu0 %v1037
      %v1076 = vpop.f32.mrb[0].mxu0
      %v1077 = vadd.f32 %v850, %v1076
      %v1078 = vpop.f32.mrb[0].mxu0
      %v1079 = vpop.f32.mrb[0].mxu0
      %v1080 = vpop.f32.mrb[0].mxu0
      %1081 = vdwg.mxu0
      %v1083 = vsel %vm851, %v839, 0
      %v1086 = vsel %vm851, %v847, 0
      %1088 = vmatprep.subr.bf16.mxu0 0
      %1089 = vmatpush1.bf16.xpose.msra.mxu0 %v1086
      %1090 = vmatprep.subr.bf16.mxu0 0
      %1091 = vmatpush1.bf16.xpose.msra.mxu0 0
      %1092 = vmatprep.subr.bf16.mxu0 0
      %1093 = vmatpush1.bf16.xpose.msra.mxu0 0
      %1094 = vmatprep.subr.bf16.mxu0 0
      %1095 = vmatpush1.bf16.xpose.msra.mxu0 0
      %1096 = vmatprep.subr.bf16.mxu0 0
      %1097 = vmatpush1.bf16.xpose.msra.mxu0 0
      %1098 = vmatprep.subr.bf16.mxu0 0
      %1099 = vmatpush1.bf16.xpose.msra.mxu0 0
      %1100 = vmatprep.subr.bf16.mxu0 0
      %1101 = vmatpush1.bf16.xpose.msra.mxu0 0
      %1102 = vmatprep.subr.bf16.mxu0 0
      %1103 = vmatpush1.bf16.xpose.msra.mxu0 0
      %1104 = vmatprep.subr.bf16.mxu0 0
      %1105 = vmatpush1.bf16.xpose.msra.mxu0 0
      %1106 = vmatprep.subr.bf16.mxu0 0
      %1107 = vmatpush1.bf16.xpose.msra.mxu0 0
      %1108 = vmatprep.subr.bf16.mxu0 0
      %1109 = vmatpush1.bf16.xpose.msra.mxu0 0
      %1110 = vmatprep.subr.bf16.mxu0 0
      %1111 = vmatpush1.bf16.xpose.msra.mxu0 0
      %1112 = vmatprep.subr.bf16.mxu0 0
      %1113 = vmatpush1.bf16.xpose.msra.mxu0 0
      %1114 = vmatprep.subr.bf16.mxu0 0
      %1115 = vmatpush1.bf16.xpose.msra.mxu0 0
      %1116 = vmatprep.subr.bf16.mxu0 0
      %1117 = vmatpush1.bf16.xpose.msra.mxu0 0
      %1118 = vmatprep.subr.bf16.mxu0 0
      %1119 = vmatpush1.bf16.xpose.msra.mxu0 0
      %1120 = vmatprep.mubr.bf16.mxu0 0
      %1121 = vmatmul.mubr.bf16.gmra.mrb[0].mxu0 %v1083
      %v1122 = vpop.f32.mrb[0].mxu0
      %v1123 = vadd.f32 %v850, %v1122
      %v1124 = vpop.f32.mrb[0].mxu0
      %v1125 = vpop.f32.mrb[0].mxu0
      %v1126 = vpop.f32.mrb[0].mxu0
      %1127 = vdwg.mxu0
      %v1129 = vsel %vm851, %v840, 0
      %v1132 = vsel %vm851, %v848, 0
      %1134 = vmatprep.subr.bf16.mxu0 0
      %1135 = vmatpush1.bf16.xpose.msra.mxu0 %v1132
      %1136 = vmatprep.subr.bf16.mxu0 0
      %1137 = vmatpush1.bf16.xpose.msra.mxu0 0
      %1138 = vmatprep.subr.bf16.mxu0 0
      %1139 = vmatpush1.bf16.xpose.msra.mxu0 0
      %1140 = vmatprep.subr.bf16.mxu0 0
      %1141 = vmatpush1.bf16.xpose.msra.mxu0 0
      %1142 = vmatprep.subr.bf16.mxu0 0
      %1143 = vmatpush1.bf16.xpose.msra.mxu0 0
      %1144 = vmatprep.subr.bf16.mxu0 0
      %1145 = vmatpush1.bf16.xpose.msra.mxu0 0
      %1146 = vmatprep.subr.bf16.mxu0 0
      %1147 = vmatpush1.bf16.xpose.msra.mxu0 0
      %1148 = vmatprep.subr.bf16.mxu0 0
      %1149 = vmatpush1.bf16.xpose.msra.mxu0 0
      %1150 = vmatprep.subr.bf16.mxu0 0
      %1151 = vmatpush1.bf16.xpose.msra.mxu0 0
      %1152 = vmatprep.subr.bf16.mxu0 0
      %1153 = vmatpush1.bf16.xpose.msra.mxu0 0
      %1154 = vmatprep.subr.bf16.mxu0 0
      %1155 = vmatpush1.bf16.xpose.msra.mxu0 0
      %1156 = vmatprep.subr.bf16.mxu0 0
      %1157 = vmatpush1.bf16.xpose.msra.mxu0 0
      %1158 = vmatprep.subr.bf16.mxu0 0
      %1159 = vmatpush1.bf16.xpose.msra.mxu0 0
      %1160 = vmatprep.subr.bf16.mxu0 0
      %1161 = vmatpush1.bf16.xpose.msra.mxu0 0
      %1162 = vmatprep.subr.bf16.mxu0 0
      %1163 = vmatpush1.bf16.xpose.msra.mxu0 0
      %1164 = vmatprep.subr.bf16.mxu0 0
      %1165 = vmatpush1.bf16.xpose.msra.mxu0 0
      %1166 = vmatprep.mubr.bf16.mxu0 0
      %1167 = vmatmul.mubr.bf16.gmra.mrb[0].mxu0 %v1129
      %v1168 = vpop.f32.mrb[0].mxu0
      %v1169 = vadd.f32 %v850, %v1168
      %v1170 = vpop.f32.mrb[0].mxu0
      %v1171 = vpop.f32.mrb[0].mxu0
      %v1172 = vpop.f32.mrb[0].mxu0
      %1173 = vdwg.mxu0
      %v1175 = vsel %vm851, %v841, 0
      %v1178 = vsel %vm851, %v849, 0
      %1180 = vmatprep.subr.bf16.mxu0 0
      %1181 = vmatpush1.bf16.xpose.msra.mxu0 %v1178
      %1182 = vmatprep.subr.bf16.mxu0 0
      %1183 = vmatpush1.bf16.xpose.msra.mxu0 0
      %1184 = vmatprep.subr.bf16.mxu0 0
      %1185 = vmatpush1.bf16.xpose.msra.mxu0 0
      %1186 = vmatprep.subr.bf16.mxu0 0
      %1187 = vmatpush1.bf16.xpose.msra.mxu0 0
      %1188 = vmatprep.subr.bf16.mxu0 0
      %1189 = vmatpush1.bf16.xpose.msra.mxu0 0
      %1190 = vmatprep.subr.bf16.mxu0 0
      %1191 = vmatpush1.bf16.xpose.msra.mxu0 0
      %1192 = vmatprep.subr.bf16.mxu0 0
      %1193 = vmatpush1.bf16.xpose.msra.mxu0 0
      %1194 = vmatprep.subr.bf16.mxu0 0
      %1195 = vmatpush1.bf16.xpose.msra.mxu0 0
      %1196 = vmatprep.subr.bf16.mxu0 0
      %1197 = vmatpush1.bf16.xpose.msra.mxu0 0
      %1198 = vmatprep.subr.bf16.mxu0 0
      %1199 = vmatpush1.bf16.xpose.msra.mxu0 0
      %1200 = vmatprep.subr.bf16.mxu0 0
      %1201 = vmatpush1.bf16.xpose.msra.mxu0 0
      %1202 = vmatprep.subr.bf16.mxu0 0
      %1203 = vmatpush1.bf16.xpose.msra.mxu0 0
      %1204 = vmatprep.subr.bf16.mxu0 0
      %1205 = vmatpush1.bf16.xpose.msra.mxu0 0
      %1206 = vmatprep.subr.bf16.mxu0 0
      %1207 = vmatpush1.bf16.xpose.msra.mxu0 0
      %1208 = vmatprep.subr.bf16.mxu0 0
      %1209 = vmatpush1.bf16.xpose.msra.mxu0 0
      %1210 = vmatprep.subr.bf16.mxu0 0
      %1211 = vmatpush1.bf16.xpose.msra.mxu0 0
      %1212 = vmatprep.mubr.bf16.mxu0 0
      %1213 = vmatmul.mubr.bf16.gmra.mrb[0].mxu0 %v1175
      %v1214 = vpop.f32.mrb[0].mxu0
      %v1215 = vadd.f32 %v850, %v1214
      %v1216 = vpop.f32.mrb[0].mxu0
      %v1217 = vpop.f32.mrb[0].mxu0
      %v1218 = vpop.f32.mrb[0].mxu0
      %1219 = vdwg.mxu0
      %v1220 = vsel %vm851, %v893, -inf
      %1221 = vmax.xlane.f32.xlu0 %v1220
      %v1222 = vpop.xlane.xlu0 %1221
      %v1223 = vsel %vm851, %v939, -inf
      %1224 = vmax.xlane.f32.xlu0 %v1223
      %v1225 = vpop.xlane.xlu0 %1224
      %v1226 = vsel %vm851, %v985, -inf
      %1227 = vmax.xlane.f32.xlu0 %v1226
      %v1228 = vpop.xlane.xlu0 %1227
      %v1229 = vsel %vm851, %v1031, -inf
      %1230 = vmax.xlane.f32.xlu0 %v1229
      %v1231 = vpop.xlane.xlu0 %1230
      %v1232 = vsel %vm851, %v1077, -inf
      %1233 = vmax.xlane.f32.xlu0 %v1232
      %v1234 = vpop.xlane.xlu0 %1233
      %v1235 = vsel %vm851, %v1123, -inf
      %1236 = vmax.xlane.f32.xlu0 %v1235
      %v1237 = vpop.xlane.xlu0 %1236
      %v1238 = vsel %vm851, %v1169, -inf
      %1239 = vmax.xlane.f32.xlu0 %v1238
      %v1240 = vpop.xlane.xlu0 %1239
      %v1241 = vsel %vm851, %v1215, -inf
      %1242 = vmax.xlane.f32.xlu0 %v1241
      %v1243 = vpop.xlane.xlu0 %1242
      %v1244 = vsub.f32 %v893, %v1222
      %v1245 = vsub.f32 %v939, %v1225
      %v1246 = vsub.f32 %v985, %v1228
      %v1247 = vsub.f32 %v1031, %v1231
      %v1248 = vsub.f32 %v1077, %v1234
      %v1249 = vsub.f32 %v1123, %v1237
      %v1250 = vsub.f32 %v1169, %v1240
      %v1251 = vsub.f32 %v1215, %v1243
      %v1252 = vmul.f32 %v1244, 1.442695
      %v1253 = vpow.pop %v1252
      %v1254 = vmul.f32 %v1245, 1.442695
      %v1255 = vpow.pop %v1254
      %v1256 = vmul.f32 %v1246, 1.442695
      %v1257 = vpow.pop %v1256
      %v1258 = vmul.f32 %v1247, 1.442695
      %v1259 = vpow.pop %v1258
      %v1260 = vmul.f32 %v1248, 1.442695
      %v1261 = vpow.pop %v1260
      %v1262 = vmul.f32 %v1249, 1.442695
      %v1263 = vpow.pop %v1262
      %v1264 = vmul.f32 %v1250, 1.442695
      %v1265 = vpow.pop %v1264
      %v1266 = vmul.f32 %v1251, 1.442695
      %v1267 = vpow.pop %v1266
      %v1268 = vsel %vm851, %v1253, 0.0
      %1269 = vadd.xlane.f32.xlu0 %v1268
      %v1270 = vpop.xlane.xlu0 %1269
      %v1271 = vsel %vm851, %v1255, 0.0
      %1272 = vadd.xlane.f32.xlu0 %v1271
      %v1273 = vpop.xlane.xlu0 %1272
      %v1274 = vsel %vm851, %v1257, 0.0
      %1275 = vadd.xlane.f32.xlu0 %v1274
      %v1276 = vpop.xlane.xlu0 %1275
      %v1277 = vsel %vm851, %v1259, 0.0
      %1278 = vadd.xlane.f32.xlu0 %v1277
      %v1279 = vpop.xlane.xlu0 %1278
      %v1280 = vsel %vm851, %v1261, 0.0
      %1281 = vadd.xlane.f32.xlu0 %v1280
      %v1282 = vpop.xlane.xlu0 %1281
      %v1283 = vsel %vm851, %v1263, 0.0
      %1284 = vadd.xlane.f32.xlu0 %v1283
      %v1285 = vpop.xlane.xlu0 %1284
      %v1286 = vsel %vm851, %v1265, 0.0
      %1287 = vadd.xlane.f32.xlu0 %v1286
      %v1288 = vpop.xlane.xlu0 %1287
      %v1289 = vsel %vm851, %v1267, 0.0
      %1290 = vadd.xlane.f32.xlu0 %v1289
      %v1291 = vpop.xlane.xlu0 %1290
      %v1292 = vrcp.pop %v1270
      %v1293 = vrcp.pop %v1273
      %v1294 = vrcp.pop %v1276
      %v1295 = vrcp.pop %v1279
      %v1296 = vrcp.pop %v1282
      %v1297 = vrcp.pop %v1285
      %v1298 = vrcp.pop %v1288
      %v1299 = vrcp.pop %v1291
      %v1300 = vmul.f32 %v1253, %v1292
      %v1301 = vmul.f32 %v1255, %v1293
      %v1302 = vmul.f32 %v1257, %v1294
      %v1303 = vmul.f32 %v1259, %v1295
      %v1304 = vmul.f32 %v1261, %v1296
      %v1305 = vmul.f32 %v1263, %v1297
      %v1306 = vmul.f32 %v1265, %v1298
      %v1307 = vmul.f32 %v1267, %v1299
      %v1308 = vpack.c.bf16 %v1300, %v1300
      %v1309 = vpack.c.bf16 %v1301, %v1301
      %v1310 = vpack.c.bf16 %v1302, %v1302
      %v1311 = vpack.c.bf16 %v1303, %v1303
      %v1312 = vpack.c.bf16 %v1304, %v1304
      %v1313 = vpack.c.bf16 %v1305, %v1305
      %v1314 = vpack.c.bf16 %v1306, %v1306
      %v1315 = vpack.c.bf16 %v1307, %v1307
      %v1316 = vpack.c.bf16 %v763, %v763
      %v1317 = vpack.c.bf16 %v814, %v814
      %v1318 = vpack.c.bf16 %v817, %v817
      %v1319 = vpack.c.bf16 %v820, %v820
      %v1320 = vpack.c.bf16 %v823, %v823
      %v1321 = vpack.c.bf16 %v826, %v826
      %v1322 = vpack.c.bf16 %v829, %v829
      %v1323 = vpack.c.bf16 %v832, %v832
      %v1325 = vsel %vm851, %v1308, 0
      %vm1327 = vcmask 1043456
      %v1329 = vsel %vm1327, %v1316, 0
      %1331 = vmatprep.subr.bf16.mxu0 0
      %1332 = vmatpush1.bf16.msra.mxu0 %v1329
      %1333 = vmatprep.subr.bf16.mxu0 0
      %1334 = vmatpush1.bf16.msra.mxu0 0
      %1335 = vmatprep.subr.bf16.mxu0 0
      %1336 = vmatpush1.bf16.msra.mxu0 0
      %1337 = vmatprep.subr.bf16.mxu0 0
      %1338 = vmatpush1.bf16.msra.mxu0 0
      %1339 = vmatprep.subr.bf16.mxu0 0
      %1340 = vmatpush1.bf16.msra.mxu0 0
      %1341 = vmatprep.subr.bf16.mxu0 0
      %1342 = vmatpush1.bf16.msra.mxu0 0
      %1343 = vmatprep.subr.bf16.mxu0 0
      %1344 = vmatpush1.bf16.msra.mxu0 0
      %1345 = vmatprep.subr.bf16.mxu0 0
      %1346 = vmatpush1.bf16.msra.mxu0 0
      %1347 = vmatprep.subr.bf16.mxu0 0
      %1348 = vmatpush1.bf16.msra.mxu0 0
      %1349 = vmatprep.subr.bf16.mxu0 0
      %1350 = vmatpush1.bf16.msra.mxu0 0
      %1351 = vmatprep.subr.bf16.mxu0 0
      %1352 = vmatpush1.bf16.msra.mxu0 0
      %1353 = vmatprep.subr.bf16.mxu0 0
      %1354 = vmatpush1.bf16.msra.mxu0 0
      %1355 = vmatprep.subr.bf16.mxu0 0
      %1356 = vmatpush1.bf16.msra.mxu0 0
      %1357 = vmatprep.subr.bf16.mxu0 0
      %1358 = vmatpush1.bf16.msra.mxu0 0
      %1359 = vmatprep.subr.bf16.mxu0 0
      %1360 = vmatpush1.bf16.msra.mxu0 0
      %1361 = vmatprep.subr.bf16.mxu0 0
      %1362 = vmatpush1.bf16.msra.mxu0 0
      %1363 = vmatprep.mubr.bf16.mxu0 0
      %1364 = vmatmul.mubr.bf16.gmra.mrb[0].mxu0 %v1325
      %v1365 = vpop.f32.mrb[0].mxu0
      %v1366 = vadd.f32 0.0, %v1365
      %v1367 = vpop.f32.mrb[0].mxu0
      %v1368 = vpop.f32.mrb[0].mxu0
      %v1369 = vpop.f32.mrb[0].mxu0
      %1370 = vdwg.mxu0
      %v1372 = vsel %vm851, %v1309, 0
      %v1375 = vsel %vm1327, %v1317, 0
      %1377 = vmatprep.subr.bf16.mxu0 0
      %1378 = vmatpush1.bf16.msra.mxu0 %v1375
      %1379 = vmatprep.subr.bf16.mxu0 0
      %1380 = vmatpush1.bf16.msra.mxu0 0
      %1381 = vmatprep.subr.bf16.mxu0 0
      %1382 = vmatpush1.bf16.msra.mxu0 0
      %1383 = vmatprep.subr.bf16.mxu0 0
      %1384 = vmatpush1.bf16.msra.mxu0 0
      %1385 = vmatprep.subr.bf16.mxu0 0
      %1386 = vmatpush1.bf16.msra.mxu0 0
      %1387 = vmatprep.subr.bf16.mxu0 0
      %1388 = vmatpush1.bf16.msra.mxu0 0
      %1389 = vmatprep.subr.bf16.mxu0 0
      %1390 = vmatpush1.bf16.msra.mxu0 0
      %1391 = vmatprep.subr.bf16.mxu0 0
      %1392 = vmatpush1.bf16.msra.mxu0 0
      %1393 = vmatprep.subr.bf16.mxu0 0
      %1394 = vmatpush1.bf16.msra.mxu0 0
      %1395 = vmatprep.subr.bf16.mxu0 0
      %1396 = vmatpush1.bf16.msra.mxu0 0
      %1397 = vmatprep.subr.bf16.mxu0 0
      %1398 = vmatpush1.bf16.msra.mxu0 0
      %1399 = vmatprep.subr.bf16.mxu0 0
      %1400 = vmatpush1.bf16.msra.mxu0 0
      %1401 = vmatprep.subr.bf16.mxu0 0
      %1402 = vmatpush1.bf16.msra.mxu0 0
      %1403 = vmatprep.subr.bf16.mxu0 0
      %1404 = vmatpush1.bf16.msra.mxu0 0
      %1405 = vmatprep.subr.bf16.mxu0 0
      %1406 = vmatpush1.bf16.msra.mxu0 0
      %1407 = vmatprep.subr.bf16.mxu0 0
      %1408 = vmatpush1.bf16.msra.mxu0 0
      %1409 = vmatprep.mubr.bf16.mxu0 0
      %1410 = vmatmul.mubr.bf16.gmra.mrb[0].mxu0 %v1372
      %v1411 = vpop.f32.mrb[0].mxu0
      %v1412 = vadd.f32 0.0, %v1411
      %v1413 = vpop.f32.mrb[0].mxu0
      %v1414 = vpop.f32.mrb[0].mxu0
      %v1415 = vpop.f32.mrb[0].mxu0
      %1416 = vdwg.mxu0
      %v1418 = vsel %vm851, %v1310, 0
      %v1421 = vsel %vm1327, %v1318, 0
      %1423 = vmatprep.subr.bf16.mxu0 0
      %1424 = vmatpush1.bf16.msra.mxu0 %v1421
      %1425 = vmatprep.subr.bf16.mxu0 0
      %1426 = vmatpush1.bf16.msra.mxu0 0
      %1427 = vmatprep.subr.bf16.mxu0 0
      %1428 = vmatpush1.bf16.msra.mxu0 0
      %1429 = vmatprep.subr.bf16.mxu0 0
      %1430 = vmatpush1.bf16.msra.mxu0 0
      %1431 = vmatprep.subr.bf16.mxu0 0
      %1432 = vmatpush1.bf16.msra.mxu0 0
      %1433 = vmatprep.subr.bf16.mxu0 0
      %1434 = vmatpush1.bf16.msra.mxu0 0
      %1435 = vmatprep.subr.bf16.mxu0 0
      %1436 = vmatpush1.bf16.msra.mxu0 0
      %1437 = vmatprep.subr.bf16.mxu0 0
      %1438 = vmatpush1.bf16.msra.mxu0 0
      %1439 = vmatprep.subr.bf16.mxu0 0
      %1440 = vmatpush1.bf16.msra.mxu0 0
      %1441 = vmatprep.subr.bf16.mxu0 0
      %1442 = vmatpush1.bf16.msra.mxu0 0
      %1443 = vmatprep.subr.bf16.mxu0 0
      %1444 = vmatpush1.bf16.msra.mxu0 0
      %1445 = vmatprep.subr.bf16.mxu0 0
      %1446 = vmatpush1.bf16.msra.mxu0 0
      %1447 = vmatprep.subr.bf16.mxu0 0
      %1448 = vmatpush1.bf16.msra.mxu0 0
      %1449 = vmatprep.subr.bf16.mxu0 0
      %1450 = vmatpush1.bf16.msra.mxu0 0
      %1451 = vmatprep.subr.bf16.mxu0 0
      %1452 = vmatpush1.bf16.msra.mxu0 0
      %1453 = vmatprep.subr.bf16.mxu0 0
      %1454 = vmatpush1.bf16.msra.mxu0 0
      %1455 = vmatprep.mubr.bf16.mxu0 0
      %1456 = vmatmul.mubr.bf16.gmra.mrb[0].mxu0 %v1418
      %v1457 = vpop.f32.mrb[0].mxu0
      %v1458 = vadd.f32 0.0, %v1457
      %v1459 = vpop.f32.mrb[0].mxu0
      %v1460 = vpop.f32.mrb[0].mxu0
      %v1461 = vpop.f32.mrb[0].mxu0
      %1462 = vdwg.mxu0
      %v1464 = vsel %vm851, %v1311, 0
      %v1467 = vsel %vm1327, %v1319, 0
      %1469 = vmatprep.subr.bf16.mxu0 0
      %1470 = vmatpush1.bf16.msra.mxu0 %v1467
      %1471 = vmatprep.subr.bf16.mxu0 0
      %1472 = vmatpush1.bf16.msra.mxu0 0
      %1473 = vmatprep.subr.bf16.mxu0 0
      %1474 = vmatpush1.bf16.msra.mxu0 0
      %1475 = vmatprep.subr.bf16.mxu0 0
      %1476 = vmatpush1.bf16.msra.mxu0 0
      %1477 = vmatprep.subr.bf16.mxu0 0
      %1478 = vmatpush1.bf16.msra.mxu0 0
      %1479 = vmatprep.subr.bf16.mxu0 0
      %1480 = vmatpush1.bf16.msra.mxu0 0
      %1481 = vmatprep.subr.bf16.mxu0 0
      %1482 = vmatpush1.bf16.msra.mxu0 0
      %1483 = vmatprep.subr.bf16.mxu0 0
      %1484 = vmatpush1.bf16.msra.mxu0 0
      %1485 = vmatprep.subr.bf16.mxu0 0
      %1486 = vmatpush1.bf16.msra.mxu0 0
      %1487 = vmatprep.subr.bf16.mxu0 0
      %1488 = vmatpush1.bf16.msra.mxu0 0
      %1489 = vmatprep.subr.bf16.mxu0 0
      %1490 = vmatpush1.bf16.msra.mxu0 0
      %1491 = vmatprep.subr.bf16.mxu0 0
      %1492 = vmatpush1.bf16.msra.mxu0 0
      %1493 = vmatprep.subr.bf16.mxu0 0
      %1494 = vmatpush1.bf16.msra.mxu0 0
      %1495 = vmatprep.subr.bf16.mxu0 0
      %1496 = vmatpush1.bf16.msra.mxu0 0
      %1497 = vmatprep.subr.bf16.mxu0 0
      %1498 = vmatpush1.bf16.msra.mxu0 0
      %1499 = vmatprep.subr.bf16.mxu0 0
      %1500 = vmatpush1.bf16.msra.mxu0 0
      %1501 = vmatprep.mubr.bf16.mxu0 0
      %1502 = vmatmul.mubr.bf16.gmra.mrb[0].mxu0 %v1464
      %v1503 = vpop.f32.mrb[0].mxu0
      %v1504 = vadd.f32 0.0, %v1503
      %v1505 = vpop.f32.mrb[0].mxu0
      %v1506 = vpop.f32.mrb[0].mxu0
      %v1507 = vpop.f32.mrb[0].mxu0
      %1508 = vdwg.mxu0
      %v1510 = vsel %vm851, %v1312, 0
      %v1513 = vsel %vm1327, %v1320, 0
      %1515 = vmatprep.subr.bf16.mxu0 0
      %1516 = vmatpush1.bf16.msra.mxu0 %v1513
      %1517 = vmatprep.subr.bf16.mxu0 0
      %1518 = vmatpush1.bf16.msra.mxu0 0
      %1519 = vmatprep.subr.bf16.mxu0 0
      %1520 = vmatpush1.bf16.msra.mxu0 0
      %1521 = vmatprep.subr.bf16.mxu0 0
      %1522 = vmatpush1.bf16.msra.mxu0 0
      %1523 = vmatprep.subr.bf16.mxu0 0
      %1524 = vmatpush1.bf16.msra.mxu0 0
      %1525 = vmatprep.subr.bf16.mxu0 0
      %1526 = vmatpush1.bf16.msra.mxu0 0
      %1527 = vmatprep.subr.bf16.mxu0 0
      %1528 = vmatpush1.bf16.msra.mxu0 0
      %1529 = vmatprep.subr.bf16.mxu0 0
      %1530 = vmatpush1.bf16.msra.mxu0 0
      %1531 = vmatprep.subr.bf16.mxu0 0
      %1532 = vmatpush1.bf16.msra.mxu0 0
      %1533 = vmatprep.subr.bf16.mxu0 0
      %1534 = vmatpush1.bf16.msra.mxu0 0
      %1535 = vmatprep.subr.bf16.mxu0 0
      %1536 = vmatpush1.bf16.msra.mxu0 0
      %1537 = vmatprep.subr.bf16.mxu0 0
      %1538 = vmatpush1.bf16.msra.mxu0 0
      %1539 = vmatprep.subr.bf16.mxu0 0
      %1540 = vmatpush1.bf16.msra.mxu0 0
      %1541 = vmatprep.subr.bf16.mxu0 0
      %1542 = vmatpush1.bf16.msra.mxu0 0
      %1543 = vmatprep.subr.bf16.mxu0 0
      %1544 = vmatpush1.bf16.msra.mxu0 0
      %1545 = vmatprep.subr.bf16.mxu0 0
      %1546 = vmatpush1.bf16.msra.mxu0 0
      %1547 = vmatprep.mubr.bf16.mxu0 0
      %1548 = vmatmul.mubr.bf16.gmra.mrb[0].mxu0 %v1510
      %v1549 = vpop.f32.mrb[0].mxu0
      %v1550 = vadd.f32 0.0, %v1549
      %v1551 = vpop.f32.mrb[0].mxu0
      %v1552 = vpop.f32.mrb[0].mxu0
      %v1553 = vpop.f32.mrb[0].mxu0
      %1554 = vdwg.mxu0
      %v1556 = vsel %vm851, %v1313, 0
      %v1559 = vsel %vm1327, %v1321, 0
      %1561 = vmatprep.subr.bf16.mxu0 0
      %1562 = vmatpush1.bf16.msra.mxu0 %v1559
      %1563 = vmatprep.subr.bf16.mxu0 0
      %1564 = vmatpush1.bf16.msra.mxu0 0
      %1565 = vmatprep.subr.bf16.mxu0 0
      %1566 = vmatpush1.bf16.msra.mxu0 0
      %1567 = vmatprep.subr.bf16.mxu0 0
      %1568 = vmatpush1.bf16.msra.mxu0 0
      %1569 = vmatprep.subr.bf16.mxu0 0
      %1570 = vmatpush1.bf16.msra.mxu0 0
      %1571 = vmatprep.subr.bf16.mxu0 0
      %1572 = vmatpush1.bf16.msra.mxu0 0
      %1573 = vmatprep.subr.bf16.mxu0 0
      %1574 = vmatpush1.bf16.msra.mxu0 0
      %1575 = vmatprep.subr.bf16.mxu0 0
      %1576 = vmatpush1.bf16.msra.mxu0 0
      %1577 = vmatprep.subr.bf16.mxu0 0
      %1578 = vmatpush1.bf16.msra.mxu0 0
      %1579 = vmatprep.subr.bf16.mxu0 0
      %1580 = vmatpush1.bf16.msra.mxu0 0
      %1581 = vmatprep.subr.bf16.mxu0 0
      %1582 = vmatpush1.bf16.msra.mxu0 0
      %1583 = vmatprep.subr.bf16.mxu0 0
      %1584 = vmatpush1.bf16.msra.mxu0 0
      %1585 = vmatprep.subr.bf16.mxu0 0
      %1586 = vmatpush1.bf16.msra.mxu0 0
      %1587 = vmatprep.subr.bf16.mxu0 0
      %1588 = vmatpush1.bf16.msra.mxu0 0
      %1589 = vmatprep.subr.bf16.mxu0 0
      %1590 = vmatpush1.bf16.msra.mxu0 0
      %1591 = vmatprep.subr.bf16.mxu0 0
      %1592 = vmatpush1.bf16.msra.mxu0 0
      %1593 = vmatprep.mubr.bf16.mxu0 0
      %1594 = vmatmul.mubr.bf16.gmra.mrb[0].mxu0 %v1556
      %v1595 = vpop.f32.mrb[0].mxu0
      %v1596 = vadd.f32 0.0, %v1595
      %v1597 = vpop.f32.mrb[0].mxu0
      %v1598 = vpop.f32.mrb[0].mxu0
      %v1599 = vpop.f32.mrb[0].mxu0
      %1600 = vdwg.mxu0
      %v1602 = vsel %vm851, %v1314, 0
      %v1605 = vsel %vm1327, %v1322, 0
      %1607 = vmatprep.subr.bf16.mxu0 0
      %1608 = vmatpush1.bf16.msra.mxu0 %v1605
      %1609 = vmatprep.subr.bf16.mxu0 0
      %1610 = vmatpush1.bf16.msra.mxu0 0
      %1611 = vmatprep.subr.bf16.mxu0 0
      %1612 = vmatpush1.bf16.msra.mxu0 0
      %1613 = vmatprep.subr.bf16.mxu0 0
      %1614 = vmatpush1.bf16.msra.mxu0 0
      %1615 = vmatprep.subr.bf16.mxu0 0
      %1616 = vmatpush1.bf16.msra.mxu0 0
      %1617 = vmatprep.subr.bf16.mxu0 0
      %1618 = vmatpush1.bf16.msra.mxu0 0
      %1619 = vmatprep.subr.bf16.mxu0 0
      %1620 = vmatpush1.bf16.msra.mxu0 0
      %1621 = vmatprep.subr.bf16.mxu0 0
      %1622 = vmatpush1.bf16.msra.mxu0 0
      %1623 = vmatprep.subr.bf16.mxu0 0
      %1624 = vmatpush1.bf16.msra.mxu0 0
      %1625 = vmatprep.subr.bf16.mxu0 0
      %1626 = vmatpush1.bf16.msra.mxu0 0
      %1627 = vmatprep.subr.bf16.mxu0 0
      %1628 = vmatpush1.bf16.msra.mxu0 0
      %1629 = vmatprep.subr.bf16.mxu0 0
      %1630 = vmatpush1.bf16.msra.mxu0 0
      %1631 = vmatprep.subr.bf16.mxu0 0
      %1632 = vmatpush1.bf16.msra.mxu0 0
      %1633 = vmatprep.subr.bf16.mxu0 0
      %1634 = vmatpush1.bf16.msra.mxu0 0
      %1635 = vmatprep.subr.bf16.mxu0 0
      %1636 = vmatpush1.bf16.msra.mxu0 0
      %1637 = vmatprep.subr.bf16.mxu0 0
      %1638 = vmatpush1.bf16.msra.mxu0 0
      %1639 = vmatprep.mubr.bf16.mxu0 0
      %1640 = vmatmul.mubr.bf16.gmra.mrb[0].mxu0 %v1602
      %v1641 = vpop.f32.mrb[0].mxu0
      %v1642 = vadd.f32 0.0, %v1641
      %v1643 = vpop.f32.mrb[0].mxu0
      %v1644 = vpop.f32.mrb[0].mxu0
      %v1645 = vpop.f32.mrb[0].mxu0
      %1646 = vdwg.mxu0
      %v1648 = vsel %vm851, %v1315, 0
      %v1651 = vsel %vm1327, %v1323, 0
      %1653 = vmatprep.subr.bf16.mxu0 0
      %1654 = vmatpush1.bf16.msra.mxu0 %v1651
      %1655 = vmatprep.subr.bf16.mxu0 0
      %1656 = vmatpush1.bf16.msra.mxu0 0
      %1657 = vmatprep.subr.bf16.mxu0 0
      %1658 = vmatpush1.bf16.msra.mxu0 0
      %1659 = vmatprep.subr.bf16.mxu0 0
      %1660 = vmatpush1.bf16.msra.mxu0 0
      %1661 = vmatprep.subr.bf16.mxu0 0
      %1662 = vmatpush1.bf16.msra.mxu0 0
      %1663 = vmatprep.subr.bf16.mxu0 0
      %1664 = vmatpush1.bf16.msra.mxu0 0
      %1665 = vmatprep.subr.bf16.mxu0 0
      %1666 = vmatpush1.bf16.msra.mxu0 0
      %1667 = vmatprep.subr.bf16.mxu0 0
      %1668 = vmatpush1.bf16.msra.mxu0 0
      %1669 = vmatprep.subr.bf16.mxu0 0
      %1670 = vmatpush1.bf16.msra.mxu0 0
      %1671 = vmatprep.subr.bf16.mxu0 0
      %1672 = vmatpush1.bf16.msra.mxu0 0
      %1673 = vmatprep.subr.bf16.mxu0 0
      %1674 = vmatpush1.bf16.msra.mxu0 0
      %1675 = vmatprep.subr.bf16.mxu0 0
      %1676 = vmatpush1.bf16.msra.mxu0 0
      %1677 = vmatprep.subr.bf16.mxu0 0
      %1678 = vmatpush1.bf16.msra.mxu0 0
      %1679 = vmatprep.subr.bf16.mxu0 0
      %1680 = vmatpush1.bf16.msra.mxu0 0
      %1681 = vmatprep.subr.bf16.mxu0 0
      %1682 = vmatpush1.bf16.msra.mxu0 0
      %1683 = vmatprep.subr.bf16.mxu0 0
      %1684 = vmatpush1.bf16.msra.mxu0 0
      %1685 = vmatprep.mubr.bf16.mxu0 0
      %1686 = vmatmul.mubr.bf16.gmra.mrb[0].mxu0 %v1648
      %v1687 = vpop.f32.mrb[0].mxu0
      %v1688 = vadd.f32 0.0, %v1687
      %v1689 = vpop.f32.mrb[0].mxu0
      %v1690 = vpop.f32.mrb[0].mxu0
      %v1691 = vpop.f32.mrb[0].mxu0
      %1692 = vdwg.mxu0
      %1694 = vrot.lane.b32.xlu0 %v1412, 8
      %v1695 = vpop.permute.xlu0 %1694
      %1698 = vrot.lane.b32.xlu0 %v1458, 16
      %v1699 = vpop.permute.xlu0 %1698
      %1702 = vrot.lane.b32.xlu0 %v1504, 24
      %v1703 = vpop.permute.xlu0 %1702
      %1706 = vrot.lane.b32.xlu0 %v1550, 32
      %v1707 = vpop.permute.xlu0 %1706
      %1710 = vrot.lane.b32.xlu0 %v1596, 40
      %v1711 = vpop.permute.xlu0 %1710
      %1714 = vrot.lane.b32.xlu0 %v1642, 48
      %v1715 = vpop.permute.xlu0 %1714
      %1718 = vrot.lane.b32.xlu0 %v1688, 56
      %v1719 = vpop.permute.xlu0 %1718
      %v1721 = vsel %vm851, %v1366, %v1695
      %vm1722 = vcmask 130048
      %v1723 = vsel %vm1722, %v1721, %v1699
      %vm1724 = vcmask 195584
      %v1725 = vsel %vm1724, %v1723, %v1703
      %vm1726 = vcmask 261120
      %v1727 = vsel %vm1726, %v1725, %v1707
      %vm1728 = vcmask 326656
      %v1729 = vsel %vm1728, %v1727, %v1711
      %vm1730 = vcmask 392192
      %v1731 = vsel %vm1730, %v1729, %v1715
      %vm1732 = vcmask 457728
      %v1733 = vsel %vm1732, %v1731, %v1719
      %v1734 = vpack.c.bf16 %v1733, %v1733
      %v1735 = vld [vmem:[%s10] sm:$0xf]
      %v1736 = vld [vmem:[%s10 + $0x4] sm:$0xf]
      %v1737 = vld [vmem:[%s10 + $0x8] sm:$0xf]
      %v1738 = vld [vmem:[%s10 + $0xc] sm:$0xf]
      %v1739 = vld [vmem:[%s10 + $0x10] sm:$0xf]
      %v1740 = vld [vmem:[%s10 + $0x14] sm:$0xf]
      %v1741 = vld [vmem:[%s10 + $0x18] sm:$0xf]
      %v1742 = vld [vmem:[%s10 + $0x1c] sm:$0xf]
      %v1743 = vld [vmem:[%s11] sm:$0x1]
      %v1745 = vlaneseq
      %v1746 = vshrl.u32 %v1745, 7
      %v1747 = vsub.s32 0, %v1746
      %v1748 = vrot.slane %v1743, %v1747
      %v1758 = vunpack.c.l.b16 %v1735
      %v1759 = vunpack.c.l.b16 %v1736
      %v1760 = vunpack.c.l.b16 %v1737
      %v1761 = vunpack.c.l.b16 %v1738
      %v1762 = vunpack.c.l.b16 %v1739
      %v1763 = vunpack.c.l.b16 %v1740
      %v1764 = vunpack.c.l.b16 %v1741
      %v1765 = vunpack.c.l.b16 %v1742
      %v1766 = vpack.c.b16 %v1759, %v1758
      %v1767 = vpack.c.b16 %v1761, %v1760
      %v1768 = vpack.c.b16 %v1763, %v1762
      %v1769 = vpack.c.b16 %v1765, %v1764
      %v1775 = vsel %vm560, %v1734, 0
      %1777 = vmatprep.subr.bf16.mxu0 0
      %1778 = vmatpush1.bf16.msra.mxu0 %v1766
      %1779 = vmatprep.subr.bf16.mxu0 0
      %1780 = vmatpush1.bf16.msra.mxu0 %v1767
      %1781 = vmatprep.subr.bf16.mxu0 0
      %1782 = vmatpush1.bf16.msra.mxu0 %v1768
      %1783 = vmatprep.subr.bf16.mxu0 0
      %1784 = vmatpush1.bf16.msra.mxu0 %v1769
      %1785 = vmatprep.subr.bf16.mxu0 0
      %1786 = vmatpush1.bf16.msra.mxu0 0
      %1787 = vmatprep.subr.bf16.mxu0 0
      %1788 = vmatpush1.bf16.msra.mxu0 0
      %1789 = vmatprep.subr.bf16.mxu0 0
      %1790 = vmatpush1.bf16.msra.mxu0 0
      %1791 = vmatprep.subr.bf16.mxu0 0
      %1792 = vmatpush1.bf16.msra.mxu0 0
      %1793 = vmatprep.subr.bf16.mxu0 0
      %1794 = vmatpush1.bf16.msra.mxu0 0
      %1795 = vmatprep.subr.bf16.mxu0 0
      %1796 = vmatpush1.bf16.msra.mxu0 0
      %1797 = vmatprep.subr.bf16.mxu0 0
      %1798 = vmatpush1.bf16.msra.mxu0 0
      %1799 = vmatprep.subr.bf16.mxu0 0
      %1800 = vmatpush1.bf16.msra.mxu0 0
      %1801 = vmatprep.subr.bf16.mxu0 0
      %1802 = vmatpush1.bf16.msra.mxu0 0
      %1803 = vmatprep.subr.bf16.mxu0 0
      %1804 = vmatpush1.bf16.msra.mxu0 0
      %1805 = vmatprep.subr.bf16.mxu0 0
      %1806 = vmatpush1.bf16.msra.mxu0 0
      %1807 = vmatprep.subr.bf16.mxu0 0
      %1808 = vmatpush1.bf16.msra.mxu0 0
      %1809 = vmatprep.mubr.bf16.mxu0 0
      %1810 = vmatmul.mubr.bf16.gmra.mrb[0].mxu0 %v1775
      %v1811 = vpop.f32.mrb[0].mxu0
      %v1812 = vadd.f32 %v1748, %v1811
      %v1813 = vpop.f32.mrb[0].mxu0
      %v1814 = vpop.f32.mrb[0].mxu0
      %v1815 = vpop.f32.mrb[0].mxu0
      %1816 = vdwg.mxu0
      %v1817 = vadd.f32 %v515, %v1812
      %v1818 = vsel %vm560, %v1817, 0.0
      %1819 = vadd.xlane.f32.xlu0 %v1818
      %v1820 = vpop.xlane.xlu0 %1819
      %v1821 = vrcp.pop 64.0
      %v1822 = vmul.f32 %v1820, %v1821
      %v1823 = vsub.f32 %v1817, %v1822
      %v1824 = vmul.f32 %v1823, %v1823
      %v1825 = vsel %vm560, %v1824, 0.0
      %1826 = vadd.xlane.f32.xlu0 %v1825
      %v1827 = vpop.xlane.xlu0 %1826
      %v1828 = vmul.f32 %v1827, %v1821
      %v1829 = vadd.f32 %v1828, 1e-05
      %v1830 = vrsqrt.pop %v1829
      %v1831 = vmul.f32 %v1823, %v1830
      %v1832 = vld [vmem:[%s12] sm:$0x1]
      %v1834 = vlaneseq
      %v1835 = vshrl.u32 %v1834, 7
      %v1836 = vsub.s32 0, %v1835
      %v1837 = vrot.slane %v1832, %v1836
      %v1839 = vmul.f32 %v1831, %v1837
      %v1840 = vld [vmem:[%s13] sm:$0x1]
      %v1842 = vlaneseq
      %v1843 = vshrl.u32 %v1842, 7
      %v1844 = vsub.s32 0, %v1843
      %v1845 = vrot.slane %v1840, %v1844
      %v1847 = vadd.f32 %v1839, %v1845
      %1848 = vst.msk [vmem:[%s513] sm:$0xff] %vm560, %v1847
      %p1849 = scmp.lt.s32.totalorder %s25, 1
      %s1850 = scalar_select %p1849, %s25, 1
      %s1851 = smul.addr %s1850, 8
      %s1852 = scalar_lea.vmem %s14, %s1851
      // Predicated region
      $region77: #{decoder_forward.7} parent=75 // pred_check
        %p1853 = pneg %p357
      $region78: #{decoder_forward.7} parent=75 // pred_check_branch
        %1855 = sbr.rel (%p1853) target = $region80
      $region79: #{decoder_forward.7} parent=75 // pred_region
        _
      $region80: #{decoder_forward.7} parent=75 // pred_fallthru
        _
    $region76: #{decoder_forward.7} parent=5 // pred_fallthru
      _
    %p1856 = scmp.le.s32.totalorder 2, %s20
    // Predicated region
    $region81: #{decoder_forward.7} parent=5 // pred_check
      %p1857 = pneg %p1856
    $region82: #{decoder_forward.7} parent=5 // pred_check_branch
      %1859 = sbr.rel (%p1857) target = $region84
    $region83: #{decoder_forward.7} parent=5 // pred_region
      %s1860 = ssub.s32 %s20, 2
      // Predicated region
      $region85: #{decoder_forward.7} parent=83 // pred_check
        %p1861 = pneg %p363
      $region86: #{decoder_forward.7} parent=83 // pred_check_branch
        %1863 = sbr.rel (%p1861) target = $region88
      $region87: #{decoder_forward.7} parent=83 // pred_region
        %p1864 = scmp.lt.s32.totalorder %s26, 1
        %s1865 = scalar_select %p1864, %s26, 1
        %s1866 = smul.addr %s1865, 8
        %s1867 = scalar_lea.vmem %s14, %s1866
      $region88: #{decoder_forward.7} parent=83 // pred_fallthru
        _
    $region84: #{decoder_forward.7} parent=5 // pred_fallthru
      _
  $region6: #{decoder_forward.7} parent=0 // loop_footer
    %s24 = sadd.s32 1, %s20
  $region7: #{decoder_forward.7} parent=0 // loop_footer_branch
    %19 = sbr.rel target = $region3
  $region8: #{decoder_forward.7} parent=0 // loop_exit
    _

</llo_original>
